<compile_context>
chip_gen: v6e
topology: v6e:2x2x1
jax: 0.10.0
libtpu: 0.0.40
codegen_flags: <defaults>
</compile_context>

<pallas_src>
import jax
import jax.numpy as jnp
from jax.experimental import pallas as pl
from jax.experimental.pallas import tpu as pltpu


def make_powerful_layer_kernel(num_layers, N, b_ch, use_mxu_mult):
    """Kernel body for one batch element (batch dim squeezed by BlockSpec)."""
    n_mlp = 2 * num_layers

    def kernel(*refs):
        # refs: x, (W_fused bf16, bias f32) * num_layers, w4, b4, out, scratch...
        x_ref = refs[0]
        mlp_refs = refs[1:1 + n_mlp]
        w4_ref = refs[1 + n_mlp]
        b4_ref = refs[2 + n_mlp]
        out_ref = refs[3 + n_mlp]
        cat_s = refs[4 + n_mlp]                  # [N*N, a+b] f32 : [ mult | x ]

        NN = N * N
        x = x_ref[...]                           # [NN, a] bf16 (cast on host)

        # ---- fused m1 || m2 UnitMLP chain: one matmul per layer, 2x-wide out.
        # bf16 operands (native MXU input), f32 accumulation; ReLU between
        # layers only (matches the PyTorch UnitMLP).
        h_in = x
        h = None
        for l in range(num_layers):
            W = mlp_refs[2 * l][...]             # bf16 [cin, 2b]
            bias = mlp_refs[2 * l + 1][...]      # f32  [1, 2b]
            h = jnp.dot(h_in, W, preferred_element_type=jnp.float32) + bias
            if l < num_layers - 1:
                h = jnp.maximum(h, 0.0)
                h_in = h.astype(jnp.bfloat16)

        out1 = h[:, :b_ch]                       # [NN, b] f32 (m1 output)
        out2 = h[:, b_ch:]                       # [NN, b] f32 (m2 output)

        # x goes once into the trailing lanes of the fused concat scratch so the
        # final Linear is a single matmul over K = a + b (no lane concat, no
        # second dot, no extra full-size f32 add).
        cat_s[:, b_ch:] = x.astype(jnp.float32)

        if use_mxu_mult:
            # Large-N path: per-channel N x N contraction as a channel-leading
            # batched matmul on the MXU. f32 operands / f32 acc so the
            # O(N)-term sum is not degraded to bf16.
            o1c = jnp.transpose(out1).reshape(b_ch, N, N)       # [c, i, j]
            o2c = jnp.transpose(out2).reshape(b_ch, N, N)       # [c, j, k]
            mc = jax.lax.dot_general(
                o1c, o2c,
                dimension_numbers=(((2,), (1,)), ((0,), (0,))),
                preferred_element_type=jnp.float32)             # [c, i, k]
            cat_s[:, :b_ch] = jnp.transpose(mc.reshape(b_ch, NN))
        else:
            # Small-N path: channel-last VPU MAC. out1/out2 staged in VMEM
            # scratch + lax.fori_loop -> bounded live ranges (no unrolled
            # Python loop), no lane-axis transposes.
            out1_s = refs[5 + n_mlp]             # [N, N, b] f32
            out2_s = refs[6 + n_mlp]             # [N, N, b] f32
            # N % 8 == 0 -> these reshapes only regroup whole sublane tiles.
            out1_s[...] = out1.reshape(N, N, b_ch)
            out2_s[...] = out2.reshape(N, N, b_ch)

            def body(i, carry):
                # mult[i, k, c] = sum_j out1[i, j, c] * out2[j, k, c]
                a1 = out1_s[i]                                        # [N(j), b]
                row = jnp.sum(a1[:, None, :] * out2_s[...], axis=0)   # [N(k), b]
                r0 = pl.multiple_of(i * N, N)
                cat_s[pl.ds(r0, N), :b_ch] = row
                return carry

            jax.lax.fori_loop(0, N, body, 0)

        # ---- single fused final Linear: [NN, a+b] f32 @ [a+b, b] f32 + bias.
        suffix = jnp.dot(cat_s[...], w4_ref[...],
                         preferred_element_type=jnp.float32) + b4_ref[...]
        out_ref[...] = suffix.astype(out_ref.dtype)

    return kernel


def _fuse_unit_mlps(m1_params, m2_params):
    """Fuse the two UnitMLPs: layer-0 weights concatenated along the output
    axis, later layers block-diagonal, so both MLPs run as one matmul chain
    over the shared input with a 2x lane-denser output."""
    fused = []
    for l, ((w1, b1), (w2, b2)) in enumerate(zip(m1_params, m2_params)):
        if l == 0:
            w = jnp.concatenate([w1, w2], axis=1)                 # [a, 2b]
        else:
            cin, cout = w1.shape
            w = jnp.zeros((2 * cin, 2 * cout), dtype=w1.dtype)
            w = w.at[:cin, :cout].set(w1)
            w = w.at[cin:, cout:].set(w2)                         # [2b, 2b]
        b = jnp.concatenate([b1, b2], axis=1)                     # [1, 2b]
        fused.append((w, b))
    return fused


def powerful_layer(x, m1_params, m2_params, w4, b4, *, num_layers,
                   mult_impl="auto"):
    """x: [B, N, N, a] f32 -> [B, N, N, b] f32. One grid step per batch elem."""
    B, N, _, a = x.shape
    b_ch = w4.shape[1]
    NN = N * N

    if mult_impl == "auto":
        use_mxu = N >= 128     # MXU pays off once N reaches the MXU tile size
    else:
        use_mxu = (mult_impl == "mxu")

    # Host-side layout / dtype plumbing (free; not compute hoisting):
    #  * x as lane-dense [B, N*N, a] bf16 rows (halves the dominant DMA bytes;
    #    x is only ever consumed as a bf16 MXU operand).
    #  * fused MLP weights bf16; biases / w4 / b4 stay f32 (w4 multiplies the
    #    f32 mult accumulator).
    x_flat = x.reshape(B, NN, a).astype(jnp.bfloat16)

    fused = _fuse_unit_mlps(m1_params, m2_params)
    flat_params = []
    for (W, bias) in fused:
        flat_params += [W.astype(jnp.bfloat16), bias.astype(jnp.float32)]
    flat_params += [w4.astype(jnp.float32), b4.astype(jnp.float32)]

    in_specs = [pl.BlockSpec((None, NN, a), lambda bt: (bt, 0, 0))]
    in_specs += [pl.BlockSpec(p.shape, lambda bt: (0, 0)) for p in flat_params]
    out_spec = pl.BlockSpec((None, NN, b_ch), lambda bt: (bt, 0, 0))

    scratch_shapes = [pltpu.VMEM((NN, a + b_ch), jnp.float32)]       # [mult | x]
    if not use_mxu:
        scratch_shapes += [pltpu.VMEM((N, N, b_ch), jnp.float32),    # out1
                           pltpu.VMEM((N, N, b_ch), jnp.float32)]    # out2

    kernel = make_powerful_layer_kernel(num_layers, N, b_ch, use_mxu)

    # Advisory cost estimate so XLA can schedule around the custom call.
    mlp_flops = 2 * B * NN * (a * 2 * b_ch + (num_layers - 1) * (2 * b_ch) ** 2)
    mult_flops = 2 * B * (N ** 3) * b_ch
    lin_flops = 2 * B * NN * (a + b_ch) * b_ch
    bytes_accessed = (
        int(x_flat.size) * x_flat.dtype.itemsize
        + B * NN * b_ch * 4
        + sum(int(p.size) * p.dtype.itemsize for p in flat_params))

    out_flat = pl.pallas_call(
        kernel,
        out_shape=jax.ShapeDtypeStruct((B, NN, b_ch), x.dtype),
        grid_spec=pltpu.PrefetchScalarGridSpec(
            num_scalar_prefetch=0,
            grid=(B,),
            in_specs=in_specs,
            out_specs=out_spec,
            scratch_shapes=scratch_shapes,
        ),
        compiler_params=pltpu.CompilerParams(
            dimension_semantics=("parallel",),
            vmem_limit_bytes=32 * 1024 * 1024,
        ),
        cost_estimate=pl.CostEstimate(
            flops=mlp_flops + mult_flops + lin_flops,
            transcendentals=0,
            bytes_accessed=bytes_accessed),
    )(x_flat, *flat_params)

    return out_flat.reshape(B, N, N, b_ch)


def reference(x, m1_params, m2_params, w4, b4):
    """Pure-JAX (f32) reference matching the PyTorch PowerfulLayer semantics."""
    def unit_mlp(h, params):
        for i, (W, bvec) in enumerate(params):
            h = jnp.einsum('bnmc,cd->bnmd', h, W) + bvec
            if i < len(params) - 1:
                h = jax.nn.relu(h)
        return h

    o1 = unit_mlp(x, m1_params)                   # [B, N, N, b]
    o2 = unit_mlp(x, m2_params)                   # [B, N, N, b]
    mult = jnp.einsum('bijc,bjkc->bikc', o1, o2)  # per-channel N x N matmul
    out = jnp.concatenate([mult, x], axis=-1)     # torch.cat((mult, x), dim=3)
    return jnp.einsum('bijc,cd->bijd', out, w4) + b4


if __name__ == "__main__":
    B, N = 2, 16
    in_feat, out_feat, num_layers = 8, 16, 2

    key = jax.random.PRNGKey(0)
    keys = jax.random.split(key, 16)
    ki = iter(keys)

    x = jax.random.normal(next(ki), (B, N, N, in_feat), dtype=jnp.float32)

    def make_mlp_params():
        params = []
        cin = in_feat
        for _ in range(num_layers):
            # Equivalent of Conv2d(cin, out_feat, (1,1)): weight stored [cin, cout]
            W = 0.1 * jax.random.normal(next(ki), (cin, out_feat), dtype=jnp.float32)
            bvec = 0.1 * jax.random.normal(next(ki), (1, out_feat), dtype=jnp.float32)
            params.append((W, bvec))
            cin = out_feat
        return params

    m1_params = make_mlp_params()
    m2_params = make_mlp_params()
    # Linear(in_feat + out_feat -> out_feat), weight stored as [a+b, b]
    w4 = 0.1 * jax.random.normal(next(ki), (in_feat + out_feat, out_feat),
                                 dtype=jnp.float32)
    b4 = 0.1 * jax.random.normal(next(ki), (1, out_feat), dtype=jnp.float32)

    out = powerful_layer(x, m1_params, m2_params, w4, b4, num_layers=num_layers)
    out = jax.block_until_ready(out)

    ref = reference(x, m1_params, m2_params, w4, b4)
    assert out.shape == (B, N, N, out_feat)
    # bf16 matmul operands (f32 accumulation) vs the f32 reference.
    assert jnp.allclose(out, ref, rtol=2e-2, atol=2e-2), "mismatch vs reference"

    print("KERNEL_OK")
</pallas_src>

<mosaic_0001>
module attributes {stable_mosaic.version = 11 : i64} {
  func.func @kernel(%arg0: i32, %arg1: memref<1x256x8xbf16, #tpu.memory_space<vmem>>, %arg2: memref<8x32xbf16, #tpu.memory_space<vmem>>, %arg3: memref<1x32xf32, #tpu.memory_space<vmem>>, %arg4: memref<32x32xbf16, #tpu.memory_space<vmem>>, %arg5: memref<1x32xf32, #tpu.memory_space<vmem>>, %arg6: memref<24x16xf32, #tpu.memory_space<vmem>>, %arg7: memref<1x16xf32, #tpu.memory_space<vmem>>, %arg8: memref<1x256x16xf32, #tpu.memory_space<vmem>>, %arg9: memref<256x24xf32, #tpu.memory_space<vmem>>, %arg10: memref<16x16x16xf32, #tpu.memory_space<vmem>>, %arg11: memref<16x16x16xf32, #tpu.memory_space<vmem>>) attributes {dimension_semantics = [#tpu.dimension_semantics<parallel>], iteration_bounds = array<i64: 2>, scalar_prefetch = 0 : i64, scratch_operands = 3 : i64, tpu.core_type = #tpu.core_type<tc>, window_params = [{transform_indices = @transform_0, window_bounds = array<i64: 1, 256, 8>}, {pipeline_mode = #tpu.pipeline_mode<synchronous>, transform_indices = @transform_1, window_bounds = array<i64: 8, 32>}, {pipeline_mode = #tpu.pipeline_mode<synchronous>, transform_indices = @transform_2, window_bounds = array<i64: 1, 32>}, {pipeline_mode = #tpu.pipeline_mode<synchronous>, transform_indices = @transform_3, window_bounds = array<i64: 32, 32>}, {pipeline_mode = #tpu.pipeline_mode<synchronous>, transform_indices = @transform_4, window_bounds = array<i64: 1, 32>}, {pipeline_mode = #tpu.pipeline_mode<synchronous>, transform_indices = @transform_5, window_bounds = array<i64: 24, 16>}, {pipeline_mode = #tpu.pipeline_mode<synchronous>, transform_indices = @transform_6, window_bounds = array<i64: 1, 16>}, {transform_indices = @transform_7, window_bounds = array<i64: 1, 256, 16>}]} {
    %c0 = arith.constant 0 : index
    %c0_0 = arith.constant 0 : index
    %c0_1 = arith.constant 0 : index
    %0 = vector.load %arg1[%c0, %c0_0, %c0_1] : memref<1x256x8xbf16, #tpu.memory_space<vmem>>, vector<1x256x8xbf16>
    %1 = vector.shape_cast %0 : vector<1x256x8xbf16> to vector<256x8xbf16>
    %c0_2 = arith.constant 0 : index
    %c0_3 = arith.constant 0 : index
    %2 = vector.load %arg2[%c0_2, %c0_3] : memref<8x32xbf16, #tpu.memory_space<vmem>>, vector<8x32xbf16>
    %c0_4 = arith.constant 0 : index
    %c0_5 = arith.constant 0 : index
    %3 = vector.load %arg3[%c0_4, %c0_5] : memref<1x32xf32, #tpu.memory_space<vmem>>, vector<1x32xf32>
    %cst = arith.constant dense<0.000000e+00> : vector<256x32xf32>
    %4 = tpu.matmul %1, %2, %cst {dimension_numbers = #tpu.dot_dimension_numbers<[1], [0], [0], [1], [0, 0, 1, 1], [], []>} : vector<256x8xbf16>, vector<8x32xbf16>, vector<256x32xf32> -> vector<256x32xf32>
    %5 = vector.broadcast %3 : vector<1x32xf32> to vector<256x32xf32>
    %6 = arith.addf %4, %5 : vector<256x32xf32>
    %cst_6 = arith.constant 0.000000e+00 : f32
    %7 = vector.broadcast %cst_6 : f32 to vector<256x32xf32>
    %8 = arith.maximumf %6, %7 : vector<256x32xf32>
    %9 = arith.truncf %8 : vector<256x32xf32> to vector<256x32xbf16>
    %c0_7 = arith.constant 0 : index
    %c0_8 = arith.constant 0 : index
    %10 = vector.load %arg4[%c0_7, %c0_8] : memref<32x32xbf16, #tpu.memory_space<vmem>>, vector<32x32xbf16>
    %c0_9 = arith.constant 0 : index
    %c0_10 = arith.constant 0 : index
    %11 = vector.load %arg5[%c0_9, %c0_10] : memref<1x32xf32, #tpu.memory_space<vmem>>, vector<1x32xf32>
    %cst_11 = arith.constant dense<0.000000e+00> : vector<256x32xf32>
    %12 = tpu.matmul %9, %10, %cst_11 {dimension_numbers = #tpu.dot_dimension_numbers<[1], [0], [0], [1], [0, 0, 1, 1], [], []>} : vector<256x32xbf16>, vector<32x32xbf16>, vector<256x32xf32> -> vector<256x32xf32>
    %13 = vector.broadcast %11 : vector<1x32xf32> to vector<256x32xf32>
    %14 = arith.addf %12, %13 : vector<256x32xf32>
    %15 = vector.extract_strided_slice %14 {offsets = [0, 0], sizes = [256, 16], strides = [1, 1]} : vector<256x32xf32> to vector<256x16xf32>
    %16 = vector.extract_strided_slice %14 {offsets = [0, 16], sizes = [256, 16], strides = [1, 1]} : vector<256x32xf32> to vector<256x16xf32>
    %17 = arith.extf %1 : vector<256x8xbf16> to vector<256x8xf32>
    %c0_12 = arith.constant 0 : index
    %c16 = arith.constant 16 : index
    %18 = vector.load %arg9[%c0_12, %c16] : memref<256x24xf32, #tpu.memory_space<vmem>>, vector<256x8xf32>
    tpu.vector_store %arg9[%c0_12, %c16], %17 {strides = array<i32>} : memref<256x24xf32, #tpu.memory_space<vmem>>, vector<256x8xf32>,
    %19 = vector.shape_cast %15 : vector<256x16xf32> to vector<16x16x16xf32>
    %c0_13 = arith.constant 0 : index
    %c0_14 = arith.constant 0 : index
    %c0_15 = arith.constant 0 : index
    %20 = vector.load %arg10[%c0_13, %c0_14, %c0_15] : memref<16x16x16xf32, #tpu.memory_space<vmem>>, vector<16x16x16xf32>
    tpu.vector_store %arg10[%c0_13, %c0_14, %c0_15], %19 {strides = array<i32>} : memref<16x16x16xf32, #tpu.memory_space<vmem>>, vector<16x16x16xf32>,
    %21 = vector.shape_cast %16 : vector<256x16xf32> to vector<16x16x16xf32>
    %c0_16 = arith.constant 0 : index
    %c0_17 = arith.constant 0 : index
    %c0_18 = arith.constant 0 : index
    %22 = vector.load %arg11[%c0_16, %c0_17, %c0_18] : memref<16x16x16xf32, #tpu.memory_space<vmem>>, vector<16x16x16xf32>
    tpu.vector_store %arg11[%c0_16, %c0_17, %c0_18], %21 {strides = array<i32>} : memref<16x16x16xf32, #tpu.memory_space<vmem>>, vector<16x16x16xf32>,
    %c0_i32 = arith.constant 0 : i32
    %c16_i32 = arith.constant 16 : i32
    %23 = arith.addi %c0_i32, %c16_i32 : i32
    %c1_i32 = arith.constant 1 : i32
    scf.for %arg12 = %c0_i32 to %23 step %c1_i32  : i32 {
      %33 = arith.index_cast %arg12 : i32 to index
      %c0_30 = arith.constant 0 : index
      %c0_31 = arith.constant 0 : index
      %34 = vector.load %arg10[%33, %c0_30, %c0_31] : memref<16x16x16xf32, #tpu.memory_space<vmem>>, vector<1x16x16xf32>
      %35 = vector.shape_cast %34 : vector<1x16x16xf32> to vector<16x16xf32>
      %36 = vector.shape_cast %35 : vector<16x16xf32> to vector<16x1x16xf32>
      %c0_32 = arith.constant 0 : index
      %c0_33 = arith.constant 0 : index
      %c0_34 = arith.constant 0 : index
      %37 = vector.load %arg11[%c0_32, %c0_33, %c0_34] : memref<16x16x16xf32, #tpu.memory_space<vmem>>, vector<16x16x16xf32>
      %38 = vector.broadcast %36 : vector<16x1x16xf32> to vector<16x16x16xf32>
      %39 = arith.mulf %38, %37 : vector<16x16x16xf32>
      %cst_35 = arith.constant dense<0.000000e+00> : vector<16x16xf32>
      %40 = vector.multi_reduction <add>, %39, %cst_35 [0] : vector<16x16x16xf32> to vector<16x16xf32>
      %c16_i32_36 = arith.constant 16 : i32
      %41 = arith.muli %arg12, %c16_i32_36 : i32
      %42 = tpu.assume_multiple %41, 16 : i32
      %43 = arith.index_cast %42 : i32 to index
      %c0_37 = arith.constant 0 : index
      %44 = vector.load %arg9[%43, %c0_37] : memref<256x24xf32, #tpu.memory_space<vmem>>, vector<16x16xf32>
      tpu.vector_store %arg9[%43, %c0_37], %40 {strides = array<i32>} : memref<256x24xf32, #tpu.memory_space<vmem>>, vector<16x16xf32>,
    }
    %c16_i32_19 = arith.constant 16 : i32
    %c0_20 = arith.constant 0 : index
    %c0_21 = arith.constant 0 : index
    %24 = vector.load %arg9[%c0_20, %c0_21] : memref<256x24xf32, #tpu.memory_space<vmem>>, vector<256x24xf32>
    %c0_22 = arith.constant 0 : index
    %c0_23 = arith.constant 0 : index
    %25 = vector.load %arg6[%c0_22, %c0_23] : memref<24x16xf32, #tpu.memory_space<vmem>>, vector<24x16xf32>
    %cst_24 = arith.constant dense<0.000000e+00> : vector<256x16xf32>
    %26 = tpu.matmul %24, %25, %cst_24 {dimension_numbers = #tpu.dot_dimension_numbers<[1], [0], [0], [1], [0, 0, 1, 1], [], []>} : vector<256x24xf32>, vector<24x16xf32>, vector<256x16xf32> -> vector<256x16xf32>
    %c0_25 = arith.constant 0 : index
    %c0_26 = arith.constant 0 : index
    %27 = vector.load %arg7[%c0_25, %c0_26] : memref<1x16xf32, #tpu.memory_space<vmem>>, vector<1x16xf32>
    %28 = vector.broadcast %27 : vector<1x16xf32> to vector<256x16xf32>
    %29 = arith.addf %26, %28 : vector<256x16xf32>
    %c0_27 = arith.constant 0 : index
    %c0_28 = arith.constant 0 : index
    %c0_29 = arith.constant 0 : index
    %30 = vector.load %arg8[%c0_27, %c0_28, %c0_29] : memref<1x256x16xf32, #tpu.memory_space<vmem>>, vector<1x256x16xf32>
    %31 = vector.shape_cast %30 : vector<1x256x16xf32> to vector<256x16xf32>
    %32 = vector.shape_cast %29 : vector<256x16xf32> to vector<1x256x16xf32>
    tpu.vector_store %arg8[%c0_27, %c0_28, %c0_29], %32 {strides = array<i32>} : memref<1x256x16xf32, #tpu.memory_space<vmem>>, vector<1x256x16xf32>,
    return
  }
  func.func @transform_0(%arg0: i32) -> (i32, i32, i32) {
    %c0_i32 = arith.constant 0 : i32
    %c0_i32_0 = arith.constant 0 : i32
    %c0_i32_1 = arith.constant 0 : i32
    return %arg0, %c0_i32, %c0_i32_0 : i32, i32, i32
  }
  func.func @transform_1(%arg0: i32) -> (i32, i32) {
    %c0_i32 = arith.constant 0 : i32
    %c0_i32_0 = arith.constant 0 : i32
    %c0_i32_1 = arith.constant 0 : i32
    return %c0_i32, %c0_i32_0 : i32, i32
  }
  func.func @transform_2(%arg0: i32) -> (i32, i32) {
    %c0_i32 = arith.constant 0 : i32
    %c0_i32_0 = arith.constant 0 : i32
    %c0_i32_1 = arith.constant 0 : i32
    return %c0_i32, %c0_i32_0 : i32, i32
  }
  func.func @transform_3(%arg0: i32) -> (i32, i32) {
    %c0_i32 = arith.constant 0 : i32
    %c0_i32_0 = arith.constant 0 : i32
    %c0_i32_1 = arith.constant 0 : i32
    return %c0_i32, %c0_i32_0 : i32, i32
  }
  func.func @transform_4(%arg0: i32) -> (i32, i32) {
    %c0_i32 = arith.constant 0 : i32
    %c0_i32_0 = arith.constant 0 : i32
    %c0_i32_1 = arith.constant 0 : i32
    return %c0_i32, %c0_i32_0 : i32, i32
  }
  func.func @transform_5(%arg0: i32) -> (i32, i32) {
    %c0_i32 = arith.constant 0 : i32
    %c0_i32_0 = arith.constant 0 : i32
    %c0_i32_1 = arith.constant 0 : i32
    return %c0_i32, %c0_i32_0 : i32, i32
  }
  func.func @transform_6(%arg0: i32) -> (i32, i32) {
    %c0_i32 = arith.constant 0 : i32
    %c0_i32_0 = arith.constant 0 : i32
    %c0_i32_1 = arith.constant 0 : i32
    return %c0_i32, %c0_i32_0 : i32, i32
  }
  func.func @transform_7(%arg0: i32) -> (i32, i32, i32) {
    %c0_i32 = arith.constant 0 : i32
    %c0_i32_0 = arith.constant 0 : i32
    %c0_i32_1 = arith.constant 0 : i32
    return %arg0, %c0_i32, %c0_i32_0 : i32, i32, i32
  }
}

</mosaic_0001>

<llo_original>
// kernel: tpu_custom_call.1
$region0: #{tpu_custom_call.1}
  #allocation0 [shape = 'u32[]', space=smem, size = 0x4, offset = 0x4, fixed_abs, tag = 'smem constant byte address 0x4 - core index']
  #allocation1 [shape = 'u32[144,128]{1,0:T(1,128)}', space=vmem, size = 0x12000, scoped, tag = 'internal scratch']
  #allocation2 [shape = 'f32[256,24]{1,0:T(8,128)}', space=vmem, size = 0x20000, scoped, tag = 'scratch operand']
  #allocation3 [shape = 'f32[16,16,16]{2,1,0:T(8,128)}', space=vmem, size = 0x20000, scoped, tag = 'scratch operand']
  #allocation4 [shape = 'f32[16,16,16]{2,1,0:T(8,128)}', space=vmem, size = 0x20000, scoped, tag = 'scratch operand']
  %s0 = inlined_call_operand.vmem [shape: bf16[2,256,8], index: 0, kind: input, shape index: {}]
  %s1 = inlined_call_operand.vmem [shape: bf16[8,32], index: 1, kind: input, shape index: {}]
  %s2 = inlined_call_operand.vmem [shape: f32[1,32], index: 2, kind: input, shape index: {}]
  %s3 = inlined_call_operand.vmem [shape: bf16[32,32], index: 3, kind: input, shape index: {}]
  %s4 = inlined_call_operand.vmem [shape: f32[1,32], index: 4, kind: input, shape index: {}]
  %s5 = inlined_call_operand.vmem [shape: f32[24,16], index: 5, kind: input, shape index: {}]
  %s6 = inlined_call_operand.vmem [shape: f32[1,16], index: 6, kind: input, shape index: {}]
  %s7 = inlined_call_operand.vmem [shape: f32[2,256,16], index: 7, kind: output, shape index: {}]
  %s8 = sld [smem:[#allocation0]]
  $region68: #{tpu_custom_call.1} parent=0
    _
  %s10 = ssub.s32 1, %s8
  %s11 = scalar_select 0, %s10, %s8
  loop: start=0, step=1, limit=4
  $region2: #{tpu_custom_call.1} parent=0 // loop_pre_header
    _
  $region3: #{tpu_custom_call.1} parent=0 // loop_header
    %s13 = sphi 0, %s17
    %p14 = scmp.ge.s32.totalorder %s13, 4
    %s23 = sphi 0, %s25
    %s26 = sphi 0, %s23
    %s27 = sphi 0, %s26
    %s43 = sphi 0, %s27
    %s47 = sphi 0, %s47
    %s49 = sphi 0, %s47
    %s50 = sphi 0, %s49
    %s64 = sphi 0, %s50
    %s68 = sphi 0, %s68
    %s70 = sphi 0, %s68
    %s71 = sphi 0, %s70
    %s85 = sphi 0, %s71
    %s89 = sphi 0, %s89
    %s91 = sphi 0, %s89
    %s92 = sphi 0, %s91
    %s106 = sphi 0, %s92
    %s110 = sphi 0, %s110
    %s112 = sphi 0, %s110
    %s113 = sphi 0, %s112
    %s127 = sphi 0, %s113
    %s131 = sphi 0, %s131
    %s133 = sphi 0, %s131
    %s134 = sphi 0, %s133
    %s148 = sphi 0, %s134
    %s152 = sphi 0, %s152
    %s154 = sphi 0, %s152
    %s155 = sphi 0, %s154
    %s169 = sphi 0, %s155
    %s175 = sphi 0, %s177
    %s178 = sphi 0, %s175
    %s179 = sphi 0, %s178
    %s195 = sphi 0, %s179
  $region4: #{tpu_custom_call.1} parent=0 // loop_header_branch
    %16 = sbr.rel (%p14) target = $region8
  $region5: #{tpu_custom_call.1} parent=0 // loop_body
    %s18 = ssub.s32 %s13, 1
    %s19 = ssub.s32 %s13, 2
    %s20 = sadd.s32 %s13, 1
    %s21 = ssub.s32 %s13, %s20
    %p22 = scmp.eq.s32.totalorder %s21, 0
    %s24 = sadd.s32 %s23, 1
    %s25 = scalar_select %p22, %s23, %s24
    %p28 = pneg %p22
    %p29 = scmp.eq.s32.totalorder %s13, 1
    %p30 = por %p28, %p29
    %p31 = scmp.ne.s32.totalorder %s23, %s26
    %p32 = scmp.eq.s32.totalorder %s13, 0
    %p33 = por %p31, %p32
    %p34 = scmp.ne.s32.totalorder %s23, %s26
    %p35 = scmp.eq.s32.totalorder %s18, 1
    %p36 = por %p34, %p35
    %p37 = scmp.ne.s32.totalorder %s26, %s27
    %p38 = scmp.eq.s32.totalorder %s18, 0
    %p39 = por %p37, %p38
    %p40 = scmp.ne.s32.totalorder %s26, %s27
    %p41 = scmp.eq.s32.totalorder %s19, 1
    %p42 = por %p40, %p41
    %p44 = scmp.ne.s32.totalorder %s27, %s43
    %p45 = scmp.eq.s32.totalorder %s19, 0
    %p46 = por %p44, %p45
    %s48 = sadd.s32 %s47, 1
    %p51 = scmp.eq.s32.totalorder %s13, 1
    %p52 = scmp.ne.s32.totalorder %s47, %s49
    %p53 = scmp.eq.s32.totalorder %s13, 0
    %p54 = por %p52, %p53
    %p55 = scmp.ne.s32.totalorder %s47, %s49
    %p56 = scmp.eq.s32.totalorder %s18, 1
    %p57 = por %p55, %p56
    %p58 = scmp.ne.s32.totalorder %s49, %s50
    %p59 = scmp.eq.s32.totalorder %s18, 0
    %p60 = por %p58, %p59
    %p61 = scmp.ne.s32.totalorder %s49, %s50
    %p62 = scmp.eq.s32.totalorder %s19, 1
    %p63 = por %p61, %p62
    %p65 = scmp.ne.s32.totalorder %s50, %s64
    %p66 = scmp.eq.s32.totalorder %s19, 0
    %p67 = por %p65, %p66
    %s69 = sadd.s32 %s68, 1
    %p72 = scmp.eq.s32.totalorder %s13, 1
    %p73 = scmp.ne.s32.totalorder %s68, %s70
    %p74 = scmp.eq.s32.totalorder %s13, 0
    %p75 = por %p73, %p74
    %p76 = scmp.ne.s32.totalorder %s68, %s70
    %p77 = scmp.eq.s32.totalorder %s18, 1
    %p78 = por %p76, %p77
    %p79 = scmp.ne.s32.totalorder %s70, %s71
    %p80 = scmp.eq.s32.totalorder %s18, 0
    %p81 = por %p79, %p80
    %p82 = scmp.ne.s32.totalorder %s70, %s71
    %p83 = scmp.eq.s32.totalorder %s19, 1
    %p84 = por %p82, %p83
    %p86 = scmp.ne.s32.totalorder %s71, %s85
    %p87 = scmp.eq.s32.totalorder %s19, 0
    %p88 = por %p86, %p87
    %s90 = sadd.s32 %s89, 1
    %p93 = scmp.eq.s32.totalorder %s13, 1
    %p94 = scmp.ne.s32.totalorder %s89, %s91
    %p95 = scmp.eq.s32.totalorder %s13, 0
    %p96 = por %p94, %p95
    %p97 = scmp.ne.s32.totalorder %s89, %s91
    %p98 = scmp.eq.s32.totalorder %s18, 1
    %p99 = por %p97, %p98
    %p100 = scmp.ne.s32.totalorder %s91, %s92
    %p101 = scmp.eq.s32.totalorder %s18, 0
    %p102 = por %p100, %p101
    %p103 = scmp.ne.s32.totalorder %s91, %s92
    %p104 = scmp.eq.s32.totalorder %s19, 1
    %p105 = por %p103, %p104
    %p107 = scmp.ne.s32.totalorder %s92, %s106
    %p108 = scmp.eq.s32.totalorder %s19, 0
    %p109 = por %p107, %p108
    %s111 = sadd.s32 %s110, 1
    %p114 = scmp.eq.s32.totalorder %s13, 1
    %p115 = scmp.ne.s32.totalorder %s110, %s112
    %p116 = scmp.eq.s32.totalorder %s13, 0
    %p117 = por %p115, %p116
    %p118 = scmp.ne.s32.totalorder %s110, %s112
    %p119 = scmp.eq.s32.totalorder %s18, 1
    %p120 = por %p118, %p119
    %p121 = scmp.ne.s32.totalorder %s112, %s113
    %p122 = scmp.eq.s32.totalorder %s18, 0
    %p123 = por %p121, %p122
    %p124 = scmp.ne.s32.totalorder %s112, %s113
    %p125 = scmp.eq.s32.totalorder %s19, 1
    %p126 = por %p124, %p125
    %p128 = scmp.ne.s32.totalorder %s113, %s127
    %p129 = scmp.eq.s32.totalorder %s19, 0
    %p130 = por %p128, %p129
    %s132 = sadd.s32 %s131, 1
    %p135 = scmp.eq.s32.totalorder %s13, 1
    %p136 = scmp.ne.s32.totalorder %s131, %s133
    %p137 = scmp.eq.s32.totalorder %s13, 0
    %p138 = por %p136, %p137
    %p139 = scmp.ne.s32.totalorder %s131, %s133
    %p140 = scmp.eq.s32.totalorder %s18, 1
    %p141 = por %p139, %p140
    %p142 = scmp.ne.s32.totalorder %s133, %s134
    %p143 = scmp.eq.s32.totalorder %s18, 0
    %p144 = por %p142, %p143
    %p145 = scmp.ne.s32.totalorder %s133, %s134
    %p146 = scmp.eq.s32.totalorder %s19, 1
    %p147 = por %p145, %p146
    %p149 = scmp.ne.s32.totalorder %s134, %s148
    %p150 = scmp.eq.s32.totalorder %s19, 0
    %p151 = por %p149, %p150
    %s153 = sadd.s32 %s152, 1
    %p156 = scmp.eq.s32.totalorder %s13, 1
    %p157 = scmp.ne.s32.totalorder %s152, %s154
    %p158 = scmp.eq.s32.totalorder %s13, 0
    %p159 = por %p157, %p158
    %p160 = scmp.ne.s32.totalorder %s152, %s154
    %p161 = scmp.eq.s32.totalorder %s18, 1
    %p162 = por %p160, %p161
    %p163 = scmp.ne.s32.totalorder %s154, %s155
    %p164 = scmp.eq.s32.totalorder %s18, 0
    %p165 = por %p163, %p164
    %p166 = scmp.ne.s32.totalorder %s154, %s155
    %p167 = scmp.eq.s32.totalorder %s19, 1
    %p168 = por %p166, %p167
    %p170 = scmp.ne.s32.totalorder %s155, %s169
    %p171 = scmp.eq.s32.totalorder %s19, 0
    %p172 = por %p170, %p171
    %s173 = ssub.s32 %s13, %s20
    %p174 = scmp.eq.s32.totalorder %s173, 0
    %s176 = sadd.s32 %s175, 1
    %s177 = scalar_select %p174, %s175, %s176
    %p180 = pneg %p174
    %p181 = scmp.eq.s32.totalorder %s13, 1
    %p182 = por %p180, %p181
    %p183 = scmp.ne.s32.totalorder %s175, %s178
    %p184 = scmp.eq.s32.totalorder %s13, 0
    %p185 = por %p183, %p184
    %p186 = scmp.ne.s32.totalorder %s175, %s178
    %p187 = scmp.eq.s32.totalorder %s18, 1
    %p188 = por %p186, %p187
    %p189 = scmp.ne.s32.totalorder %s178, %s179
    %p190 = scmp.eq.s32.totalorder %s18, 0
    %p191 = por %p189, %p190
    %p192 = scmp.ne.s32.totalorder %s178, %s179
    %p193 = scmp.eq.s32.totalorder %s19, 1
    %p194 = por %p192, %p193
    %p196 = scmp.ne.s32.totalorder %s179, %s195
    %p197 = scmp.eq.s32.totalorder %s19, 0
    %p198 = por %p196, %p197
    %p199 = scmp.le.s32.totalorder 1, %s13
    %p200 = scmp.lt.s32.totalorder %s13, 3
    %p201 = pnand %p199, %p200
    %p202 = pneg %p201
    // Predicated region
    $region9: #{tpu_custom_call.1} parent=5 // pred_check
      _
    $region10: #{tpu_custom_call.1} parent=5 // pred_check_branch
      %204 = sbr.rel (%p201) target = $region12
    $region11: #{tpu_custom_call.1} parent=5 // pred_region
      %s205 = ssub.s32 %s13, 1
      // Predicated region
      $region13: #{tpu_custom_call.1} parent=11 // pred_check
        %p206 = pneg %p60
      $region14: #{tpu_custom_call.1} parent=11 // pred_check_branch
        %208 = sbr.rel (%p206) target = $region16
      $region15: #{tpu_custom_call.1} parent=11 // pred_region
        _
      $region16: #{tpu_custom_call.1} parent=11 // pred_fallthru
        _
      // Predicated region
      $region17: #{tpu_custom_call.1} parent=11 // pred_check
        %p209 = pneg %p81
      $region18: #{tpu_custom_call.1} parent=11 // pred_check_branch
        %211 = sbr.rel (%p209) target = $region20
      $region19: #{tpu_custom_call.1} parent=11 // pred_region
        _
      $region20: #{tpu_custom_call.1} parent=11 // pred_fallthru
        _
      // Predicated region
      $region21: #{tpu_custom_call.1} parent=11 // pred_check
        %p212 = pneg %p102
      $region22: #{tpu_custom_call.1} parent=11 // pred_check_branch
        %214 = sbr.rel (%p212) target = $region24
      $region23: #{tpu_custom_call.1} parent=11 // pred_region
        _
      $region24: #{tpu_custom_call.1} parent=11 // pred_fallthru
        _
      // Predicated region
      $region25: #{tpu_custom_call.1} parent=11 // pred_check
        %p215 = pneg %p123
      $region26: #{tpu_custom_call.1} parent=11 // pred_check_branch
        %217 = sbr.rel (%p215) target = $region28
      $region27: #{tpu_custom_call.1} parent=11 // pred_region
        _
      $region28: #{tpu_custom_call.1} parent=11 // pred_fallthru
        _
      // Predicated region
      $region29: #{tpu_custom_call.1} parent=11 // pred_check
        %p218 = pneg %p144
      $region30: #{tpu_custom_call.1} parent=11 // pred_check_branch
        %220 = sbr.rel (%p218) target = $region32
      $region31: #{tpu_custom_call.1} parent=11 // pred_region
        _
      $region32: #{tpu_custom_call.1} parent=11 // pred_fallthru
        _
      // Predicated region
      $region33: #{tpu_custom_call.1} parent=11 // pred_check
        %p221 = pneg %p165
      $region34: #{tpu_custom_call.1} parent=11 // pred_check_branch
        %223 = sbr.rel (%p221) target = $region36
      $region35: #{tpu_custom_call.1} parent=11 // pred_region
        _
      $region36: #{tpu_custom_call.1} parent=11 // pred_fallthru
        _
    $region12: #{tpu_custom_call.1} parent=5 // pred_fallthru
      _
    %p224 = scmp.lt.s32.totalorder %s13, 2
    // Predicated region
    $region37: #{tpu_custom_call.1} parent=5 // pred_check
      %p225 = pneg %p224
    $region38: #{tpu_custom_call.1} parent=5 // pred_check_branch
      %227 = sbr.rel (%p225) target = $region40
    $region39: #{tpu_custom_call.1} parent=5 // pred_region
      // Predicated region
      $region41: #{tpu_custom_call.1} parent=39 // pred_check
        %p228 = pneg %p33
      $region42: #{tpu_custom_call.1} parent=39 // pred_check_branch
        %230 = sbr.rel (%p228) target = $region44
      $region43: #{tpu_custom_call.1} parent=39 // pred_region
        %p231 = scmp.lt.s32.totalorder %s13, 1
        %s232 = scalar_select %p231, %s13, 1
        %s233 = smul.addr %s232, 32
        %s234 = smul.addr %s233, 4
        %s235 = scalar_lea.vmem %s0, %s234
      $region44: #{tpu_custom_call.1} parent=39 // pred_fallthru
        _
    $region40: #{tpu_custom_call.1} parent=5 // pred_fallthru
      _
    %p236 = scmp.le.s32.totalorder 1, %s13
    %p237 = scmp.lt.s32.totalorder %s13, 3
    %p238 = pnand %p236, %p237
    %p239 = pneg %p238
    // Predicated region
    $region45: #{tpu_custom_call.1} parent=5 // pred_check
      _
    $region46: #{tpu_custom_call.1} parent=5 // pred_check_branch
      %241 = sbr.rel (%p238) target = $region48
    $region47: #{tpu_custom_call.1} parent=5 // pred_region
      %s242 = ssub.s32 %s13, 1
      %p243 = scmp.lt.s32.totalorder %s18, 1
      %s244 = scalar_select %p243, %s18, 1
      %s245 = smul.addr %s244, 32
      %s246 = smul.addr %s245, 4
      %s247 = scalar_lea.vmem %s0, %s246
      %p248 = pneg %p39
      %p249 = pneg %p36
      %p250 = pneg %p60
      %p251 = pneg %p57
      %p252 = pneg %p81
      %p253 = pneg %p78
      %p254 = pneg %p102
      %p255 = pneg %p99
      %p256 = pneg %p123
      %p257 = pneg %p120
      %p258 = pneg %p144
      %p259 = pneg %p141
      %p260 = pneg %p165
      %p261 = pneg %p162
      %p262 = pneg %p191
      %p263 = pneg %p188
      %p264 = scmp.lt.s32.totalorder %s18, 1
      %s265 = scalar_select %p264, %s18, 1
      %s266 = smul.addr %s265, 32
      %s267 = smul.addr %s266, 8
      %s268 = scalar_lea.vmem %s7, %s267
      %p269 = scmp.lt.s32.totalorder %s18, 1
      %s270 = scalar_select %p269, %s18, 1
      %s271 = smul.addr %s270, 32
      %s272 = smul.addr %s271, 4
      %s273 = scalar_lea.vmem %s0, %s272
      %p274 = scmp.lt.s32.totalorder %s18, 1
      %s275 = scalar_select %p274, %s18, 1
      %s276 = smul.addr %s275, 32
      %s277 = smul.addr %s276, 8
      %s278 = scalar_lea.vmem %s7, %s277
      %v280 = vld [vmem:[%s273] sm:$0xf]
      %v281 = vld [vmem:[%s273 + $0x4] sm:$0xf]
      %v282 = vld [vmem:[%s273 + $0x8] sm:$0xf]
      %v283 = vld [vmem:[%s273 + $0xc] sm:$0xf]
      %v284 = vld [vmem:[%s273 + $0x10] sm:$0xf]
      %v285 = vld [vmem:[%s273 + $0x14] sm:$0xf]
      %v286 = vld [vmem:[%s273 + $0x18] sm:$0xf]
      %v287 = vld [vmem:[%s273 + $0x1c] sm:$0xf]
      %v288 = vld [vmem:[%s273 + $0x20] sm:$0xf]
      %v289 = vld [vmem:[%s273 + $0x24] sm:$0xf]
      %v290 = vld [vmem:[%s273 + $0x28] sm:$0xf]
      %v291 = vld [vmem:[%s273 + $0x2c] sm:$0xf]
      %v292 = vld [vmem:[%s273 + $0x30] sm:$0xf]
      %v293 = vld [vmem:[%s273 + $0x34] sm:$0xf]
      %v294 = vld [vmem:[%s273 + $0x38] sm:$0xf]
      %v295 = vld [vmem:[%s273 + $0x3c] sm:$0xf]
      %v296 = vld [vmem:[%s273 + $0x40] sm:$0xf]
      %v297 = vld [vmem:[%s273 + $0x44] sm:$0xf]
      %v298 = vld [vmem:[%s273 + $0x48] sm:$0xf]
      %v299 = vld [vmem:[%s273 + $0x4c] sm:$0xf]
      %v300 = vld [vmem:[%s273 + $0x50] sm:$0xf]
      %v301 = vld [vmem:[%s273 + $0x54] sm:$0xf]
      %v302 = vld [vmem:[%s273 + $0x58] sm:$0xf]
      %v303 = vld [vmem:[%s273 + $0x5c] sm:$0xf]
      %v304 = vld [vmem:[%s273 + $0x60] sm:$0xf]
      %v305 = vld [vmem:[%s273 + $0x64] sm:$0xf]
      %v306 = vld [vmem:[%s273 + $0x68] sm:$0xf]
      %v307 = vld [vmem:[%s273 + $0x6c] sm:$0xf]
      %v308 = vld [vmem:[%s273 + $0x70] sm:$0xf]
      %v309 = vld [vmem:[%s273 + $0x74] sm:$0xf]
      %v310 = vld [vmem:[%s273 + $0x78] sm:$0xf]
      %v311 = vld [vmem:[%s273 + $0x7c] sm:$0xf]
      %v312 = vld [vmem:[%s1] sm:$0xf]
      %v313 = vld [vmem:[%s2] sm:$0x1]
      %v315 = vlaneseq
      %v316 = vshrl.u32 %v315, 7
      %v317 = vsub.s32 0, %v316
      %v318 = vrot.slane %v313, %v317
      %v352 = vunpack.c.l.b16 %v280
      %v353 = vunpack.c.l.b16 %v281
      %v354 = vunpack.c.l.b16 %v282
      %v355 = vunpack.c.l.b16 %v283
      %v356 = vunpack.c.l.b16 %v284
      %v357 = vunpack.c.l.b16 %v285
      %v358 = vunpack.c.l.b16 %v286
      %v359 = vunpack.c.l.b16 %v287
      %v360 = vunpack.c.l.b16 %v288
      %v361 = vunpack.c.l.b16 %v289
      %v362 = vunpack.c.l.b16 %v290
      %v363 = vunpack.c.l.b16 %v291
      %v364 = vunpack.c.l.b16 %v292
      %v365 = vunpack.c.l.b16 %v293
      %v366 = vunpack.c.l.b16 %v294
      %v367 = vunpack.c.l.b16 %v295
      %v368 = vunpack.c.l.b16 %v296
      %v369 = vunpack.c.l.b16 %v297
      %v370 = vunpack.c.l.b16 %v298
      %v371 = vunpack.c.l.b16 %v299
      %v372 = vunpack.c.l.b16 %v300
      %v373 = vunpack.c.l.b16 %v301
      %v374 = vunpack.c.l.b16 %v302
      %v375 = vunpack.c.l.b16 %v303
      %v376 = vunpack.c.l.b16 %v304
      %v377 = vunpack.c.l.b16 %v305
      %v378 = vunpack.c.l.b16 %v306
      %v379 = vunpack.c.l.b16 %v307
      %v380 = vunpack.c.l.b16 %v308
      %v381 = vunpack.c.l.b16 %v309
      %v382 = vunpack.c.l.b16 %v310
      %v383 = vunpack.c.l.b16 %v311
      %v384 = vpack.c.b16 %v353, %v352
      %v385 = vpack.c.b16 %v355, %v354
      %v386 = vpack.c.b16 %v357, %v356
      %v387 = vpack.c.b16 %v359, %v358
      %v388 = vpack.c.b16 %v361, %v360
      %v389 = vpack.c.b16 %v363, %v362
      %v390 = vpack.c.b16 %v365, %v364
      %v391 = vpack.c.b16 %v367, %v366
      %v392 = vpack.c.b16 %v369, %v368
      %v393 = vpack.c.b16 %v371, %v370
      %v394 = vpack.c.b16 %v373, %v372
      %v395 = vpack.c.b16 %v375, %v374
      %v396 = vpack.c.b16 %v377, %v376
      %v397 = vpack.c.b16 %v379, %v378
      %v398 = vpack.c.b16 %v381, %v380
      %v399 = vpack.c.b16 %v383, %v382
      %vm400 = vcmask 64512
      %v402 = vsel %vm400, %v384, 0
      %v405 = vsel %vm400, %v385, 0
      %v408 = vsel %vm400, %v386, 0
      %v411 = vsel %vm400, %v387, 0
      %v414 = vsel %vm400, %v388, 0
      %v417 = vsel %vm400, %v389, 0
      %v420 = vsel %vm400, %v390, 0
      %v423 = vsel %vm400, %v391, 0
      %v426 = vsel %vm400, %v392, 0
      %v429 = vsel %vm400, %v393, 0
      %v432 = vsel %vm400, %v394, 0
      %v435 = vsel %vm400, %v395, 0
      %v438 = vsel %vm400, %v396, 0
      %v441 = vsel %vm400, %v397, 0
      %v444 = vsel %vm400, %v398, 0
      %v447 = vsel %vm400, %v399, 0
      %vm449 = vcmask 1043456
      %v451 = vsel %vm449, %v312, 0
      %453 = vmatprep.subr.bf16.mxu0 0
      %454 = vmatpush1.bf16.msra.mxu0 0
      %455 = vmatprep.subr.bf16.mxu0 0
      %456 = vmatpush1.bf16.msra.mxu0 0
      %457 = vmatprep.subr.bf16.mxu0 0
      %458 = vmatpush1.bf16.msra.mxu0 0
      %459 = vmatprep.subr.bf16.mxu0 0
      %460 = vmatpush1.bf16.msra.mxu0 0
      %461 = vmatprep.subr.bf16.mxu0 0
      %462 = vmatpush1.bf16.msra.mxu0 0
      %463 = vmatprep.subr.bf16.mxu0 0
      %464 = vmatpush1.bf16.msra.mxu0 0
      %465 = vmatprep.subr.bf16.mxu0 0
      %466 = vmatpush1.bf16.msra.mxu0 0
      %467 = vmatprep.subr.bf16.mxu0 0
      %468 = vmatpush1.bf16.msra.mxu0 %v451
      %469 = vmatprep.subr.bf16.mxu0 0
      %470 = vmatpush2.bf16.msra.mxu0 0
      %471 = vmatprep.subr.bf16.mxu0 0
      %472 = vmatpush2.bf16.msra.mxu0 0
      %473 = vmatprep.subr.bf16.mxu0 0
      %474 = vmatpush2.bf16.msra.mxu0 0
      %475 = vmatprep.subr.bf16.mxu0 0
      %476 = vmatpush2.bf16.msra.mxu0 0
      %477 = vmatprep.subr.bf16.mxu0 0
      %478 = vmatpush2.bf16.msra.mxu0 0
      %479 = vmatprep.subr.bf16.mxu0 0
      %480 = vmatpush2.bf16.msra.mxu0 0
      %481 = vmatprep.subr.bf16.mxu0 0
      %482 = vmatpush2.bf16.msra.mxu0 0
      %483 = vmatprep.subr.bf16.mxu0 0
      %484 = vmatpush2.bf16.msra.mxu0 0
      %485 = vmatprep.mubr.bf16.mxu0 0
      %486 = vmatmul.mubr.bf16.gmra.mxu0 %v402
      %v487 = vpop.f32.mrf.mxu0
      %v488 = vadd.f32 %v318, %v487
      %v489 = vpop.f32.mrf.mxu0
      %v490 = vpop.f32.mrf.mxu0
      %v491 = vadd.f32 %v318, %v490
      %v492 = vpop.f32.mrf.mxu0
      %493 = vmatprep.mubr.bf16.mxu0 0
      %494 = vmatmul.mubr.bf16.gmra.mxu0 %v405
      %v495 = vpop.f32.mrf.mxu0
      %v496 = vadd.f32 %v318, %v495
      %v497 = vpop.f32.mrf.mxu0
      %v498 = vpop.f32.mrf.mxu0
      %v499 = vadd.f32 %v318, %v498
      %v500 = vpop.f32.mrf.mxu0
      %501 = vmatprep.mubr.bf16.mxu0 0
      %502 = vmatmul.mubr.bf16.gmra.mxu0 %v408
      %v503 = vpop.f32.mrf.mxu0
      %v504 = vadd.f32 %v318, %v503
      %v505 = vpop.f32.mrf.mxu0
      %v506 = vpop.f32.mrf.mxu0
      %v507 = vadd.f32 %v318, %v506
      %v508 = vpop.f32.mrf.mxu0
      %509 = vmatprep.mubr.bf16.mxu0 0
      %510 = vmatmul.mubr.bf16.gmra.mxu0 %v411
      %v511 = vpop.f32.mrf.mxu0
      %v512 = vadd.f32 %v318, %v511
      %v513 = vpop.f32.mrf.mxu0
      %v514 = vpop.f32.mrf.mxu0
      %v515 = vadd.f32 %v318, %v514
      %v516 = vpop.f32.mrf.mxu0
      %517 = vmatprep.mubr.bf16.mxu0 0
      %518 = vmatmul.mubr.bf16.gmra.mxu0 %v414
      %v519 = vpop.f32.mrf.mxu0
      %v520 = vadd.f32 %v318, %v519
      %v521 = vpop.f32.mrf.mxu0
      %v522 = vpop.f32.mrf.mxu0
      %v523 = vadd.f32 %v318, %v522
      %v524 = vpop.f32.mrf.mxu0
      %525 = vmatprep.mubr.bf16.mxu0 0
      %526 = vmatmul.mubr.bf16.gmra.mxu0 %v417
      %v527 = vpop.f32.mrf.mxu0
      %v528 = vadd.f32 %v318, %v527
      %v529 = vpop.f32.mrf.mxu0
      %v530 = vpop.f32.mrf.mxu0
      %v531 = vadd.f32 %v318, %v530
      %v532 = vpop.f32.mrf.mxu0
      %533 = vmatprep.mubr.bf16.mxu0 0
      %534 = vmatmul.mubr.bf16.gmra.mxu0 %v420
      %v535 = vpop.f32.mrf.mxu0
      %v536 = vadd.f32 %v318, %v535
      %v537 = vpop.f32.mrf.mxu0
      %v538 = vpop.f32.mrf.mxu0
      %v539 = vadd.f32 %v318, %v538
      %v540 = vpop.f32.mrf.mxu0
      %541 = vmatprep.mubr.bf16.mxu0 0
      %542 = vmatmul.mubr.bf16.gmra.mxu0 %v423
      %v543 = vpop.f32.mrf.mxu0
      %v544 = vadd.f32 %v318, %v543
      %v545 = vpop.f32.mrf.mxu0
      %v546 = vpop.f32.mrf.mxu0
      %v547 = vadd.f32 %v318, %v546
      %v548 = vpop.f32.mrf.mxu0
      %549 = vmatprep.mubr.bf16.mxu0 0
      %550 = vmatmul.mubr.bf16.gmra.mxu0 %v426
      %v551 = vpop.f32.mrf.mxu0
      %v552 = vadd.f32 %v318, %v551
      %v553 = vpop.f32.mrf.mxu0
      %v554 = vpop.f32.mrf.mxu0
      %v555 = vadd.f32 %v318, %v554
      %v556 = vpop.f32.mrf.mxu0
      %557 = vmatprep.mubr.bf16.mxu0 0
      %558 = vmatmul.mubr.bf16.gmra.mxu0 %v429
      %v559 = vpop.f32.mrf.mxu0
      %v560 = vadd.f32 %v318, %v559
      %v561 = vpop.f32.mrf.mxu0
      %v562 = vpop.f32.mrf.mxu0
      %v563 = vadd.f32 %v318, %v562
      %v564 = vpop.f32.mrf.mxu0
      %565 = vmatprep.mubr.bf16.mxu0 0
      %566 = vmatmul.mubr.bf16.gmra.mxu0 %v432
      %v567 = vpop.f32.mrf.mxu0
      %v568 = vadd.f32 %v318, %v567
      %v569 = vpop.f32.mrf.mxu0
      %v570 = vpop.f32.mrf.mxu0
      %v571 = vadd.f32 %v318, %v570
      %v572 = vpop.f32.mrf.mxu0
      %573 = vmatprep.mubr.bf16.mxu0 0
      %574 = vmatmul.mubr.bf16.gmra.mxu0 %v435
      %v575 = vpop.f32.mrf.mxu0
      %v576 = vadd.f32 %v318, %v575
      %v577 = vpop.f32.mrf.mxu0
      %v578 = vpop.f32.mrf.mxu0
      %v579 = vadd.f32 %v318, %v578
      %v580 = vpop.f32.mrf.mxu0
      %581 = vmatprep.mubr.bf16.mxu0 0
      %582 = vmatmul.mubr.bf16.gmra.mxu0 %v438
      %v583 = vpop.f32.mrf.mxu0
      %v584 = vadd.f32 %v318, %v583
      %v585 = vpop.f32.mrf.mxu0
      %v586 = vpop.f32.mrf.mxu0
      %v587 = vadd.f32 %v318, %v586
      %v588 = vpop.f32.mrf.mxu0
      %589 = vmatprep.mubr.bf16.mxu0 0
      %590 = vmatmul.mubr.bf16.gmra.mxu0 %v441
      %v591 = vpop.f32.mrf.mxu0
      %v592 = vadd.f32 %v318, %v591
      %v593 = vpop.f32.mrf.mxu0
      %v594 = vpop.f32.mrf.mxu0
      %v595 = vadd.f32 %v318, %v594
      %v596 = vpop.f32.mrf.mxu0
      %597 = vmatprep.mubr.bf16.mxu0 0
      %598 = vmatmul.mubr.bf16.gmra.mxu0 %v444
      %v599 = vpop.f32.mrf.mxu0
      %v600 = vadd.f32 %v318, %v599
      %v601 = vpop.f32.mrf.mxu0
      %v602 = vpop.f32.mrf.mxu0
      %v603 = vadd.f32 %v318, %v602
      %v604 = vpop.f32.mrf.mxu0
      %605 = vmatprep.mubr.bf16.mxu0 0
      %606 = vmatmul.mubr.bf16.gmra.mxu0 %v447
      %v607 = vpop.f32.mrf.mxu0
      %v608 = vadd.f32 %v318, %v607
      %v609 = vpop.f32.mrf.mxu0
      %v610 = vpop.f32.mrf.mxu0
      %v611 = vadd.f32 %v318, %v610
      %v612 = vpop.f32.mrf.mxu0
      %613 = vdwg.mxu0
      %v614 = vmax.f32 %v488, 0.0
      %v615 = vmax.f32 %v491, 0.0
      %v616 = vmax.f32 %v496, 0.0
      %v617 = vmax.f32 %v499, 0.0
      %v618 = vmax.f32 %v504, 0.0
      %v619 = vmax.f32 %v507, 0.0
      %v620 = vmax.f32 %v512, 0.0
      %v621 = vmax.f32 %v515, 0.0
      %v622 = vmax.f32 %v520, 0.0
      %v623 = vmax.f32 %v523, 0.0
      %v624 = vmax.f32 %v528, 0.0
      %v625 = vmax.f32 %v531, 0.0
      %v626 = vmax.f32 %v536, 0.0
      %v627 = vmax.f32 %v539, 0.0
      %v628 = vmax.f32 %v544, 0.0
      %v629 = vmax.f32 %v547, 0.0
      %v630 = vmax.f32 %v552, 0.0
      %v631 = vmax.f32 %v555, 0.0
      %v632 = vmax.f32 %v560, 0.0
      %v633 = vmax.f32 %v563, 0.0
      %v634 = vmax.f32 %v568, 0.0
      %v635 = vmax.f32 %v571, 0.0
      %v636 = vmax.f32 %v576, 0.0
      %v637 = vmax.f32 %v579, 0.0
      %v638 = vmax.f32 %v584, 0.0
      %v639 = vmax.f32 %v587, 0.0
      %v640 = vmax.f32 %v592, 0.0
      %v641 = vmax.f32 %v595, 0.0
      %v642 = vmax.f32 %v600, 0.0
      %v643 = vmax.f32 %v603, 0.0
      %v644 = vmax.f32 %v608, 0.0
      %v645 = vmax.f32 %v611, 0.0
      %v646 = vpack.c.bf16 %v615, %v614
      %v647 = vpack.c.bf16 %v617, %v616
      %v648 = vpack.c.bf16 %v619, %v618
      %v649 = vpack.c.bf16 %v621, %v620
      %v650 = vpack.c.bf16 %v623, %v622
      %v651 = vpack.c.bf16 %v625, %v624
      %v652 = vpack.c.bf16 %v627, %v626
      %v653 = vpack.c.bf16 %v629, %v628
      %v654 = vpack.c.bf16 %v631, %v630
      %v655 = vpack.c.bf16 %v633, %v632
      %v656 = vpack.c.bf16 %v635, %v634
      %v657 = vpack.c.bf16 %v637, %v636
      %v658 = vpack.c.bf16 %v639, %v638
      %v659 = vpack.c.bf16 %v641, %v640
      %v660 = vpack.c.bf16 %v643, %v642
      %v661 = vpack.c.bf16 %v645, %v644
      %v662 = vld [vmem:[%s3] sm:$0xf]
      %v663 = vld [vmem:[%s3 + $0x4] sm:$0xf]
      %v664 = vld [vmem:[%s3 + $0x8] sm:$0xf]
      %v665 = vld [vmem:[%s3 + $0xc] sm:$0xf]
      %v666 = vld [vmem:[%s4] sm:$0x1]
      %v668 = vlaneseq
      %v669 = vshrl.u32 %v668, 7
      %v670 = vsub.s32 0, %v669
      %v671 = vrot.slane %v666, %v670
      %v677 = vunpack.c.l.b16 %v662
      %v678 = vunpack.c.l.b16 %v663
      %v679 = vunpack.c.l.b16 %v664
      %v680 = vunpack.c.l.b16 %v665
      %v681 = vpack.c.b16 %v678, %v677
      %v682 = vpack.c.b16 %v680, %v679
      %vm685 = vcmask 261120
      %v687 = vsel %vm685, %v646, 0
      %v690 = vsel %vm685, %v647, 0
      %v693 = vsel %vm685, %v648, 0
      %v696 = vsel %vm685, %v649, 0
      %v699 = vsel %vm685, %v650, 0
      %v702 = vsel %vm685, %v651, 0
      %v705 = vsel %vm685, %v652, 0
      %v708 = vsel %vm685, %v653, 0
      %v711 = vsel %vm685, %v654, 0
      %v714 = vsel %vm685, %v655, 0
      %v717 = vsel %vm685, %v656, 0
      %v720 = vsel %vm685, %v657, 0
      %v723 = vsel %vm685, %v658, 0
      %v726 = vsel %vm685, %v659, 0
      %v729 = vsel %vm685, %v660, 0
      %v732 = vsel %vm685, %v661, 0
      %734 = vmatprep.subr.bf16.mxu0 0
      %735 = vmatpush1.bf16.msra.mxu0 0
      %736 = vmatprep.subr.bf16.mxu0 0
      %737 = vmatpush1.bf16.msra.mxu0 0
      %738 = vmatprep.subr.bf16.mxu0 0
      %739 = vmatpush1.bf16.msra.mxu0 0
      %740 = vmatprep.subr.bf16.mxu0 0
      %741 = vmatpush1.bf16.msra.mxu0 0
      %742 = vmatprep.subr.bf16.mxu0 0
      %743 = vmatpush1.bf16.msra.mxu0 0
      %744 = vmatprep.subr.bf16.mxu0 0
      %745 = vmatpush1.bf16.msra.mxu0 0
      %746 = vmatprep.subr.bf16.mxu0 0
      %747 = vmatpush1.bf16.msra.mxu0 %v682
      %748 = vmatprep.subr.bf16.mxu0 0
      %749 = vmatpush1.bf16.msra.mxu0 %v681
      %750 = vmatprep.subr.bf16.mxu0 0
      %751 = vmatpush2.bf16.msra.mxu0 0
      %752 = vmatprep.subr.bf16.mxu0 0
      %753 = vmatpush2.bf16.msra.mxu0 0
      %754 = vmatprep.subr.bf16.mxu0 0
      %755 = vmatpush2.bf16.msra.mxu0 0
      %756 = vmatprep.subr.bf16.mxu0 0
      %757 = vmatpush2.bf16.msra.mxu0 0
      %758 = vmatprep.subr.bf16.mxu0 0
      %759 = vmatpush2.bf16.msra.mxu0 0
      %760 = vmatprep.subr.bf16.mxu0 0
      %761 = vmatpush2.bf16.msra.mxu0 0
      %762 = vmatprep.subr.bf16.mxu0 0
      %763 = vmatpush2.bf16.msra.mxu0 0
      %764 = vmatprep.subr.bf16.mxu0 0
      %765 = vmatpush2.bf16.msra.mxu0 0
      %766 = vmatprep.mubr.bf16.mxu0 0
      %767 = vmatmul.mubr.bf16.gmra.mxu0 %v687
      %v768 = vpop.f32.mrf.mxu0
      %v769 = vadd.f32 %v671, %v768
      %v770 = vpop.f32.mrf.mxu0
      %v771 = vpop.f32.mrf.mxu0
      %v772 = vadd.f32 %v671, %v771
      %v773 = vpop.f32.mrf.mxu0
      %774 = vmatprep.mubr.bf16.mxu0 0
      %775 = vmatmul.mubr.bf16.gmra.mxu0 %v690
      %v776 = vpop.f32.mrf.mxu0
      %v777 = vadd.f32 %v671, %v776
      %v778 = vpop.f32.mrf.mxu0
      %v779 = vpop.f32.mrf.mxu0
      %v780 = vadd.f32 %v671, %v779
      %v781 = vpop.f32.mrf.mxu0
      %782 = vmatprep.mubr.bf16.mxu0 0
      %783 = vmatmul.mubr.bf16.gmra.mxu0 %v693
      %v784 = vpop.f32.mrf.mxu0
      %v785 = vadd.f32 %v671, %v784
      %v786 = vpop.f32.mrf.mxu0
      %v787 = vpop.f32.mrf.mxu0
      %v788 = vadd.f32 %v671, %v787
      %v789 = vpop.f32.mrf.mxu0
      %790 = vmatprep.mubr.bf16.mxu0 0
      %791 = vmatmul.mubr.bf16.gmra.mxu0 %v696
      %v792 = vpop.f32.mrf.mxu0
      %v793 = vadd.f32 %v671, %v792
      %v794 = vpop.f32.mrf.mxu0
      %v795 = vpop.f32.mrf.mxu0
      %v796 = vadd.f32 %v671, %v795
      %v797 = vpop.f32.mrf.mxu0
      %798 = vmatprep.mubr.bf16.mxu0 0
      %799 = vmatmul.mubr.bf16.gmra.mxu0 %v699
      %v800 = vpop.f32.mrf.mxu0
      %v801 = vadd.f32 %v671, %v800
      %v802 = vpop.f32.mrf.mxu0
      %v803 = vpop.f32.mrf.mxu0
      %v804 = vadd.f32 %v671, %v803
      %v805 = vpop.f32.mrf.mxu0
      %806 = vmatprep.mubr.bf16.mxu0 0
      %807 = vmatmul.mubr.bf16.gmra.mxu0 %v702
      %v808 = vpop.f32.mrf.mxu0
      %v809 = vadd.f32 %v671, %v808
      %v810 = vpop.f32.mrf.mxu0
      %v811 = vpop.f32.mrf.mxu0
      %v812 = vadd.f32 %v671, %v811
      %v813 = vpop.f32.mrf.mxu0
      %814 = vmatprep.mubr.bf16.mxu0 0
      %815 = vmatmul.mubr.bf16.gmra.mxu0 %v705
      %v816 = vpop.f32.mrf.mxu0
      %v817 = vadd.f32 %v671, %v816
      %v818 = vpop.f32.mrf.mxu0
      %v819 = vpop.f32.mrf.mxu0
      %v820 = vadd.f32 %v671, %v819
      %v821 = vpop.f32.mrf.mxu0
      %822 = vmatprep.mubr.bf16.mxu0 0
      %823 = vmatmul.mubr.bf16.gmra.mxu0 %v708
      %v824 = vpop.f32.mrf.mxu0
      %v825 = vadd.f32 %v671, %v824
      %v826 = vpop.f32.mrf.mxu0
      %v827 = vpop.f32.mrf.mxu0
      %v828 = vadd.f32 %v671, %v827
      %v829 = vpop.f32.mrf.mxu0
      %830 = vmatprep.mubr.bf16.mxu0 0
      %831 = vmatmul.mubr.bf16.gmra.mxu0 %v711
      %v832 = vpop.f32.mrf.mxu0
      %v833 = vadd.f32 %v671, %v832
      %v834 = vpop.f32.mrf.mxu0
      %v835 = vpop.f32.mrf.mxu0
      %v836 = vadd.f32 %v671, %v835
      %v837 = vpop.f32.mrf.mxu0
      %838 = vmatprep.mubr.bf16.mxu0 0
      %839 = vmatmul.mubr.bf16.gmra.mxu0 %v714
      %v840 = vpop.f32.mrf.mxu0
      %v841 = vadd.f32 %v671, %v840
      %v842 = vpop.f32.mrf.mxu0
      %v843 = vpop.f32.mrf.mxu0
      %v844 = vadd.f32 %v671, %v843
      %v845 = vpop.f32.mrf.mxu0
      %846 = vmatprep.mubr.bf16.mxu0 0
      %847 = vmatmul.mubr.bf16.gmra.mxu0 %v717
      %v848 = vpop.f32.mrf.mxu0
      %v849 = vadd.f32 %v671, %v848
      %v850 = vpop.f32.mrf.mxu0
      %v851 = vpop.f32.mrf.mxu0
      %v852 = vadd.f32 %v671, %v851
      %v853 = vpop.f32.mrf.mxu0
      %854 = vmatprep.mubr.bf16.mxu0 0
      %855 = vmatmul.mubr.bf16.gmra.mxu0 %v720
      %v856 = vpop.f32.mrf.mxu0
      %v857 = vadd.f32 %v671, %v856
      %v858 = vpop.f32.mrf.mxu0
      %v859 = vpop.f32.mrf.mxu0
      %v860 = vadd.f32 %v671, %v859
      %v861 = vpop.f32.mrf.mxu0
      %862 = vmatprep.mubr.bf16.mxu0 0
      %863 = vmatmul.mubr.bf16.gmra.mxu0 %v723
      %v864 = vpop.f32.mrf.mxu0
      %v865 = vadd.f32 %v671, %v864
      %v866 = vpop.f32.mrf.mxu0
      %v867 = vpop.f32.mrf.mxu0
      %v868 = vadd.f32 %v671, %v867
      %v869 = vpop.f32.mrf.mxu0
      %870 = vmatprep.mubr.bf16.mxu0 0
      %871 = vmatmul.mubr.bf16.gmra.mxu0 %v726
      %v872 = vpop.f32.mrf.mxu0
      %v873 = vadd.f32 %v671, %v872
      %v874 = vpop.f32.mrf.mxu0
      %v875 = vpop.f32.mrf.mxu0
      %v876 = vadd.f32 %v671, %v875
      %v877 = vpop.f32.mrf.mxu0
      %878 = vmatprep.mubr.bf16.mxu0 0
      %879 = vmatmul.mubr.bf16.gmra.mxu0 %v729
      %v880 = vpop.f32.mrf.mxu0
      %v881 = vadd.f32 %v671, %v880
      %v882 = vpop.f32.mrf.mxu0
      %v883 = vpop.f32.mrf.mxu0
      %v884 = vadd.f32 %v671, %v883
      %v885 = vpop.f32.mrf.mxu0
      %886 = vmatprep.mubr.bf16.mxu0 0
      %887 = vmatmul.mubr.bf16.gmra.mxu0 %v732
      %v888 = vpop.f32.mrf.mxu0
      %v889 = vadd.f32 %v671, %v888
      %v890 = vpop.f32.mrf.mxu0
      %v891 = vpop.f32.mrf.mxu0
      %v892 = vadd.f32 %v671, %v891
      %v893 = vpop.f32.mrf.mxu0
      %894 = vdwg.mxu0
      %v895 = vunpack.c.l.bf16 %v280
      %v896 = vunpack.c.l.bf16 %v281
      %v897 = vunpack.c.l.bf16 %v282
      %v898 = vunpack.c.l.bf16 %v283
      %v899 = vunpack.c.l.bf16 %v284
      %v900 = vunpack.c.l.bf16 %v285
      %v901 = vunpack.c.l.bf16 %v286
      %v902 = vunpack.c.l.bf16 %v287
      %v903 = vunpack.c.l.bf16 %v288
      %v904 = vunpack.c.l.bf16 %v289
      %v905 = vunpack.c.l.bf16 %v290
      %v906 = vunpack.c.l.bf16 %v291
      %v907 = vunpack.c.l.bf16 %v292
      %v908 = vunpack.c.l.bf16 %v293
      %v909 = vunpack.c.l.bf16 %v294
      %v910 = vunpack.c.l.bf16 %v295
      %v911 = vunpack.c.l.bf16 %v296
      %v912 = vunpack.c.l.bf16 %v297
      %v913 = vunpack.c.l.bf16 %v298
      %v914 = vunpack.c.l.bf16 %v299
      %v915 = vunpack.c.l.bf16 %v300
      %v916 = vunpack.c.l.bf16 %v301
      %v917 = vunpack.c.l.bf16 %v302
      %v918 = vunpack.c.l.bf16 %v303
      %v919 = vunpack.c.l.bf16 %v304
      %v920 = vunpack.c.l.bf16 %v305
      %v921 = vunpack.c.l.bf16 %v306
      %v922 = vunpack.c.l.bf16 %v307
      %v923 = vunpack.c.l.bf16 %v308
      %v924 = vunpack.c.l.bf16 %v309
      %v925 = vunpack.c.l.bf16 %v310
      %v926 = vunpack.c.l.bf16 %v311
      %959 = vrot.lane.b32.xlu0 %v895, 16
      %v960 = vpop.permute.xlu0 %959
      %961 = vrot.lane.b32.xlu0 %v896, 16
      %v962 = vpop.permute.xlu0 %961
      %963 = vrot.lane.b32.xlu0 %v897, 16
      %v964 = vpop.permute.xlu0 %963
      %965 = vrot.lane.b32.xlu0 %v898, 16
      %v966 = vpop.permute.xlu0 %965
      %967 = vrot.lane.b32.xlu0 %v899, 16
      %v968 = vpop.permute.xlu0 %967
      %969 = vrot.lane.b32.xlu0 %v900, 16
      %v970 = vpop.permute.xlu0 %969
      %971 = vrot.lane.b32.xlu0 %v901, 16
      %v972 = vpop.permute.xlu0 %971
      %973 = vrot.lane.b32.xlu0 %v902, 16
      %v974 = vpop.permute.xlu0 %973
      %975 = vrot.lane.b32.xlu0 %v903, 16
      %v976 = vpop.permute.xlu0 %975
      %977 = vrot.lane.b32.xlu0 %v904, 16
      %v978 = vpop.permute.xlu0 %977
      %979 = vrot.lane.b32.xlu0 %v905, 16
      %v980 = vpop.permute.xlu0 %979
      %981 = vrot.lane.b32.xlu0 %v906, 16
      %v982 = vpop.permute.xlu0 %981
      %983 = vrot.lane.b32.xlu0 %v907, 16
      %v984 = vpop.permute.xlu0 %983
      %985 = vrot.lane.b32.xlu0 %v908, 16
      %v986 = vpop.permute.xlu0 %985
      %987 = vrot.lane.b32.xlu0 %v909, 16
      %v988 = vpop.permute.xlu0 %987
      %989 = vrot.lane.b32.xlu0 %v910, 16
      %v990 = vpop.permute.xlu0 %989
      %991 = vrot.lane.b32.xlu0 %v911, 16
      %v992 = vpop.permute.xlu0 %991
      %993 = vrot.lane.b32.xlu0 %v912, 16
      %v994 = vpop.permute.xlu0 %993
      %995 = vrot.lane.b32.xlu0 %v913, 16
      %v996 = vpop.permute.xlu0 %995
      %997 = vrot.lane.b32.xlu0 %v914, 16
      %v998 = vpop.permute.xlu0 %997
      %999 = vrot.lane.b32.xlu0 %v915, 16
      %v1000 = vpop.permute.xlu0 %999
      %1001 = vrot.lane.b32.xlu0 %v916, 16
      %v1002 = vpop.permute.xlu0 %1001
      %1003 = vrot.lane.b32.xlu0 %v917, 16
      %v1004 = vpop.permute.xlu0 %1003
      %1005 = vrot.lane.b32.xlu0 %v918, 16
      %v1006 = vpop.permute.xlu0 %1005
      %1007 = vrot.lane.b32.xlu0 %v919, 16
      %v1008 = vpop.permute.xlu0 %1007
      %1009 = vrot.lane.b32.xlu0 %v920, 16
      %v1010 = vpop.permute.xlu0 %1009
      %1011 = vrot.lane.b32.xlu0 %v921, 16
      %v1012 = vpop.permute.xlu0 %1011
      %1013 = vrot.lane.b32.xlu0 %v922, 16
      %v1014 = vpop.permute.xlu0 %1013
      %1015 = vrot.lane.b32.xlu0 %v923, 16
      %v1016 = vpop.permute.xlu0 %1015
      %1017 = vrot.lane.b32.xlu0 %v924, 16
      %v1018 = vpop.permute.xlu0 %1017
      %1019 = vrot.lane.b32.xlu0 %v925, 16
      %v1020 = vpop.permute.xlu0 %1019
      %1021 = vrot.lane.b32.xlu0 %v926, 16
      %v1022 = vpop.permute.xlu0 %1021
      %vm1055 = vcmask 195712
      %1056 = vst.msk [vmem:[#allocation2] sm:$0xff] %vm1055, %v960
      %1057 = vst.msk [vmem:[#allocation2 + $0x8] sm:$0xff] %vm1055, %v962
      %1058 = vst.msk [vmem:[#allocation2 + $0x10] sm:$0xff] %vm1055, %v964
      %1059 = vst.msk [vmem:[#allocation2 + $0x18] sm:$0xff] %vm1055, %v966
      %1060 = vst.msk [vmem:[#allocation2 + $0x20] sm:$0xff] %vm1055, %v968
      %1061 = vst.msk [vmem:[#allocation2 + $0x28] sm:$0xff] %vm1055, %v970
      %1062 = vst.msk [vmem:[#allocation2 + $0x30] sm:$0xff] %vm1055, %v972
      %1063 = vst.msk [vmem:[#allocation2 + $0x38] sm:$0xff] %vm1055, %v974
      %1064 = vst.msk [vmem:[#allocation2 + $0x40] sm:$0xff] %vm1055, %v976
      %1065 = vst.msk [vmem:[#allocation2 + $0x48] sm:$0xff] %vm1055, %v978
      %1066 = vst.msk [vmem:[#allocation2 + $0x50] sm:$0xff] %vm1055, %v980
      %1067 = vst.msk [vmem:[#allocation2 + $0x58] sm:$0xff] %vm1055, %v982
      %1068 = vst.msk [vmem:[#allocation2 + $0x60] sm:$0xff] %vm1055, %v984
      %1069 = vst.msk [vmem:[#allocation2 + $0x68] sm:$0xff] %vm1055, %v986
      %1070 = vst.msk [vmem:[#allocation2 + $0x70] sm:$0xff] %vm1055, %v988
      %1071 = vst.msk [vmem:[#allocation2 + $0x78] sm:$0xff] %vm1055, %v990
      %1072 = vst.msk [vmem:[#allocation2 + $0x80] sm:$0xff] %vm1055, %v992
      %1073 = vst.msk [vmem:[#allocation2 + $0x88] sm:$0xff] %vm1055, %v994
      %1074 = vst.msk [vmem:[#allocation2 + $0x90] sm:$0xff] %vm1055, %v996
      %1075 = vst.msk [vmem:[#allocation2 + $0x98] sm:$0xff] %vm1055, %v998
      %1076 = vst.msk [vmem:[#allocation2 + $0xa0] sm:$0xff] %vm1055, %v1000
      %1077 = vst.msk [vmem:[#allocation2 + $0xa8] sm:$0xff] %vm1055, %v1002
      %1078 = vst.msk [vmem:[#allocation2 + $0xb0] sm:$0xff] %vm1055, %v1004
      %1079 = vst.msk [vmem:[#allocation2 + $0xb8] sm:$0xff] %vm1055, %v1006
      %1080 = vst.msk [vmem:[#allocation2 + $0xc0] sm:$0xff] %vm1055, %v1008
      %1081 = vst.msk [vmem:[#allocation2 + $0xc8] sm:$0xff] %vm1055, %v1010
      %1082 = vst.msk [vmem:[#allocation2 + $0xd0] sm:$0xff] %vm1055, %v1012
      %1083 = vst.msk [vmem:[#allocation2 + $0xd8] sm:$0xff] %vm1055, %v1014
      %1084 = vst.msk [vmem:[#allocation2 + $0xe0] sm:$0xff] %vm1055, %v1016
      %1085 = vst.msk [vmem:[#allocation2 + $0xe8] sm:$0xff] %vm1055, %v1018
      %1086 = vst.msk [vmem:[#allocation2 + $0xf0] sm:$0xff] %vm1055, %v1020
      %1087 = vst.msk [vmem:[#allocation2 + $0xf8] sm:$0xff] %vm1055, %v1022
      %vm1088 = vcmask 130048
      %1089 = vst.msk [vmem:[#allocation3] sm:$0xff] %vm1088, %v769
      %1090 = vst.msk [vmem:[#allocation3 + $0x8] sm:$0xff] %vm1088, %v772
      %1091 = vst.msk [vmem:[#allocation3 + $0x10] sm:$0xff] %vm1088, %v777
      %1092 = vst.msk [vmem:[#allocation3 + $0x18] sm:$0xff] %vm1088, %v780
      %1093 = vst.msk [vmem:[#allocation3 + $0x20] sm:$0xff] %vm1088, %v785
      %1094 = vst.msk [vmem:[#allocation3 + $0x28] sm:$0xff] %vm1088, %v788
      %1095 = vst.msk [vmem:[#allocation3 + $0x30] sm:$0xff] %vm1088, %v793
      %1096 = vst.msk [vmem:[#allocation3 + $0x38] sm:$0xff] %vm1088, %v796
      %1097 = vst.msk [vmem:[#allocation3 + $0x40] sm:$0xff] %vm1088, %v801
      %1098 = vst.msk [vmem:[#allocation3 + $0x48] sm:$0xff] %vm1088, %v804
      %1099 = vst.msk [vmem:[#allocation3 + $0x50] sm:$0xff] %vm1088, %v809
      %1100 = vst.msk [vmem:[#allocation3 + $0x58] sm:$0xff] %vm1088, %v812
      %1101 = vst.msk [vmem:[#allocation3 + $0x60] sm:$0xff] %vm1088, %v817
      %1102 = vst.msk [vmem:[#allocation3 + $0x68] sm:$0xff] %vm1088, %v820
      %1103 = vst.msk [vmem:[#allocation3 + $0x70] sm:$0xff] %vm1088, %v825
      %1104 = vst.msk [vmem:[#allocation3 + $0x78] sm:$0xff] %vm1088, %v828
      %1105 = vst.msk [vmem:[#allocation3 + $0x80] sm:$0xff] %vm1088, %v833
      %1106 = vst.msk [vmem:[#allocation3 + $0x88] sm:$0xff] %vm1088, %v836
      %1107 = vst.msk [vmem:[#allocation3 + $0x90] sm:$0xff] %vm1088, %v841
      %1108 = vst.msk [vmem:[#allocation3 + $0x98] sm:$0xff] %vm1088, %v844
      %1109 = vst.msk [vmem:[#allocation3 + $0xa0] sm:$0xff] %vm1088, %v849
      %1110 = vst.msk [vmem:[#allocation3 + $0xa8] sm:$0xff] %vm1088, %v852
      %1111 = vst.msk [vmem:[#allocation3 + $0xb0] sm:$0xff] %vm1088, %v857
      %1112 = vst.msk [vmem:[#allocation3 + $0xb8] sm:$0xff] %vm1088, %v860
      %1113 = vst.msk [vmem:[#allocation3 + $0xc0] sm:$0xff] %vm1088, %v865
      %1114 = vst.msk [vmem:[#allocation3 + $0xc8] sm:$0xff] %vm1088, %v868
      %1115 = vst.msk [vmem:[#allocation3 + $0xd0] sm:$0xff] %vm1088, %v873
      %1116 = vst.msk [vmem:[#allocation3 + $0xd8] sm:$0xff] %vm1088, %v876
      %1117 = vst.msk [vmem:[#allocation3 + $0xe0] sm:$0xff] %vm1088, %v881
      %1118 = vst.msk [vmem:[#allocation3 + $0xe8] sm:$0xff] %vm1088, %v884
      %1119 = vst.msk [vmem:[#allocation3 + $0xf0] sm:$0xff] %vm1088, %v889
      %1120 = vst.msk [vmem:[#allocation3 + $0xf8] sm:$0xff] %vm1088, %v892
      %1153 = vrot.lane.b32.xlu0 %v769, 112
      %v1154 = vpop.permute.xlu0 %1153
      %1155 = vrot.lane.b32.xlu0 %v772, 112
      %v1156 = vpop.permute.xlu0 %1155
      %1157 = vrot.lane.b32.xlu0 %v777, 112
      %v1158 = vpop.permute.xlu0 %1157
      %1159 = vrot.lane.b32.xlu0 %v780, 112
      %v1160 = vpop.permute.xlu0 %1159
      %1161 = vrot.lane.b32.xlu0 %v785, 112
      %v1162 = vpop.permute.xlu0 %1161
      %1163 = vrot.lane.b32.xlu0 %v788, 112
      %v1164 = vpop.permute.xlu0 %1163
      %1165 = vrot.lane.b32.xlu0 %v793, 112
      %v1166 = vpop.permute.xlu0 %1165
      %1167 = vrot.lane.b32.xlu0 %v796, 112
      %v1168 = vpop.permute.xlu0 %1167
      %1169 = vrot.lane.b32.xlu0 %v801, 112
      %v1170 = vpop.permute.xlu0 %1169
      %1171 = vrot.lane.b32.xlu0 %v804, 112
      %v1172 = vpop.permute.xlu0 %1171
      %1173 = vrot.lane.b32.xlu0 %v809, 112
      %v1174 = vpop.permute.xlu0 %1173
      %1175 = vrot.lane.b32.xlu0 %v812, 112
      %v1176 = vpop.permute.xlu0 %1175
      %1177 = vrot.lane.b32.xlu0 %v817, 112
      %v1178 = vpop.permute.xlu0 %1177
      %1179 = vrot.lane.b32.xlu0 %v820, 112
      %v1180 = vpop.permute.xlu0 %1179
      %1181 = vrot.lane.b32.xlu0 %v825, 112
      %v1182 = vpop.permute.xlu0 %1181
      %1183 = vrot.lane.b32.xlu0 %v828, 112
      %v1184 = vpop.permute.xlu0 %1183
      %1185 = vrot.lane.b32.xlu0 %v833, 112
      %v1186 = vpop.permute.xlu0 %1185
      %1187 = vrot.lane.b32.xlu0 %v836, 112
      %v1188 = vpop.permute.xlu0 %1187
      %1189 = vrot.lane.b32.xlu0 %v841, 112
      %v1190 = vpop.permute.xlu0 %1189
      %1191 = vrot.lane.b32.xlu0 %v844, 112
      %v1192 = vpop.permute.xlu0 %1191
      %1193 = vrot.lane.b32.xlu0 %v849, 112
      %v1194 = vpop.permute.xlu0 %1193
      %1195 = vrot.lane.b32.xlu0 %v852, 112
      %v1196 = vpop.permute.xlu0 %1195
      %1197 = vrot.lane.b32.xlu0 %v857, 112
      %v1198 = vpop.permute.xlu0 %1197
      %1199 = vrot.lane.b32.xlu0 %v860, 112
      %v1200 = vpop.permute.xlu0 %1199
      %1201 = vrot.lane.b32.xlu0 %v865, 112
      %v1202 = vpop.permute.xlu0 %1201
      %1203 = vrot.lane.b32.xlu0 %v868, 112
      %v1204 = vpop.permute.xlu0 %1203
      %1205 = vrot.lane.b32.xlu0 %v873, 112
      %v1206 = vpop.permute.xlu0 %1205
      %1207 = vrot.lane.b32.xlu0 %v876, 112
      %v1208 = vpop.permute.xlu0 %1207
      %1209 = vrot.lane.b32.xlu0 %v881, 112
      %v1210 = vpop.permute.xlu0 %1209
      %1211 = vrot.lane.b32.xlu0 %v884, 112
      %v1212 = vpop.permute.xlu0 %1211
      %1213 = vrot.lane.b32.xlu0 %v889, 112
      %v1214 = vpop.permute.xlu0 %1213
      %1215 = vrot.lane.b32.xlu0 %v892, 112
      %v1216 = vpop.permute.xlu0 %1215
      %1249 = vst.msk [vmem:[#allocation4] sm:$0xff] %vm1088, %v1154
      %1250 = vst.msk [vmem:[#allocation4 + $0x8] sm:$0xff] %vm1088, %v1156
      %1251 = vst.msk [vmem:[#allocation4 + $0x10] sm:$0xff] %vm1088, %v1158
      %1252 = vst.msk [vmem:[#allocation4 + $0x18] sm:$0xff] %vm1088, %v1160
      %1253 = vst.msk [vmem:[#allocation4 + $0x20] sm:$0xff] %vm1088, %v1162
      %1254 = vst.msk [vmem:[#allocation4 + $0x28] sm:$0xff] %vm1088, %v1164
      %1255 = vst.msk [vmem:[#allocation4 + $0x30] sm:$0xff] %vm1088, %v1166
      %1256 = vst.msk [vmem:[#allocation4 + $0x38] sm:$0xff] %vm1088, %v1168
      %1257 = vst.msk [vmem:[#allocation4 + $0x40] sm:$0xff] %vm1088, %v1170
      %1258 = vst.msk [vmem:[#allocation4 + $0x48] sm:$0xff] %vm1088, %v1172
      %1259 = vst.msk [vmem:[#allocation4 + $0x50] sm:$0xff] %vm1088, %v1174
      %1260 = vst.msk [vmem:[#allocation4 + $0x58] sm:$0xff] %vm1088, %v1176
      %1261 = vst.msk [vmem:[#allocation4 + $0x60] sm:$0xff] %vm1088, %v1178
      %1262 = vst.msk [vmem:[#allocation4 + $0x68] sm:$0xff] %vm1088, %v1180
      %1263 = vst.msk [vmem:[#allocation4 + $0x70] sm:$0xff] %vm1088, %v1182
      %1264 = vst.msk [vmem:[#allocation4 + $0x78] sm:$0xff] %vm1088, %v1184
      %1265 = vst.msk [vmem:[#allocation4 + $0x80] sm:$0xff] %vm1088, %v1186
      %1266 = vst.msk [vmem:[#allocation4 + $0x88] sm:$0xff] %vm1088, %v1188
      %1267 = vst.msk [vmem:[#allocation4 + $0x90] sm:$0xff] %vm1088, %v1190
      %1268 = vst.msk [vmem:[#allocation4 + $0x98] sm:$0xff] %vm1088, %v1192
      %1269 = vst.msk [vmem:[#allocation4 + $0xa0] sm:$0xff] %vm1088, %v1194
      %1270 = vst.msk [vmem:[#allocation4 + $0xa8] sm:$0xff] %vm1088, %v1196
      %1271 = vst.msk [vmem:[#allocation4 + $0xb0] sm:$0xff] %vm1088, %v1198
      %1272 = vst.msk [vmem:[#allocation4 + $0xb8] sm:$0xff] %vm1088, %v1200
      %1273 = vst.msk [vmem:[#allocation4 + $0xc0] sm:$0xff] %vm1088, %v1202
      %1274 = vst.msk [vmem:[#allocation4 + $0xc8] sm:$0xff] %vm1088, %v1204
      %1275 = vst.msk [vmem:[#allocation4 + $0xd0] sm:$0xff] %vm1088, %v1206
      %1276 = vst.msk [vmem:[#allocation4 + $0xd8] sm:$0xff] %vm1088, %v1208
      %1277 = vst.msk [vmem:[#allocation4 + $0xe0] sm:$0xff] %vm1088, %v1210
      %1278 = vst.msk [vmem:[#allocation4 + $0xe8] sm:$0xff] %vm1088, %v1212
      %1279 = vst.msk [vmem:[#allocation4 + $0xf0] sm:$0xff] %vm1088, %v1214
      %1280 = vst.msk [vmem:[#allocation4 + $0xf8] sm:$0xff] %vm1088, %v1216
      loop: start=0, step=1, limit=16
      $region49: #{tpu_custom_call.1} parent=47 // loop_pre_header
        _
      $region50: #{tpu_custom_call.1} parent=47 // loop_header
        %s1282 = sphi 0, %s1286
        %p1283 = scmp.ge.s32.totalorder %s1282, 16
      $region51: #{tpu_custom_call.1} parent=47 // loop_header_branch
        %1285 = sbr.rel (%p1283) target = $region55
      $region52: #{tpu_custom_call.1} parent=47 // loop_body
        %s1287 = smul.u32 %s1282, 16
        %s1288 = scalar_lea.vmem [#allocation3], %s1287
        %v1289 = vld [vmem:[%s1288] sm:$0xff]
        %v1290 = vld [vmem:[%s1288 + $0x8] sm:$0xff]
        %v1293 = vcombine.high %v1289, %v1289
        %v1295 = vunpack.c.l.s4 1966171168
        %v1296 = vunpack.c.0.s8 %v1295
        %v1297 = vlaneseq
        %v1298 = vshrl.u32 %v1297, 7
        %v1299 = vsub.s32 %v1296, %v1298
        %v1300 = vrot.slane %v1289, %v1299
        %v1302 = vunpack.c.l.s4 1966171168
        %v1303 = vunpack.c.0.s8 %v1302
        %v1304 = vlaneseq
        %v1305 = vshrl.u32 %v1304, 7
        %v1306 = vsub.s32 %v1303, %v1305
        %v1307 = vrot.slane %v1293, %v1306
        %v1308 = vcombine.high %v1300, %v1300
        %v1309 = vcombine.high %v1307, %v1307
        %v1311 = vunpack.c.l.s4 1966171168
        %v1312 = vunpack.c.0.s8 %v1311
        %v1313 = vlaneseq
        %v1314 = vshrl.u32 %v1313, 7
        %v1315 = vsub.s32 %v1312, %v1314
        %v1316 = vrot.slane %v1300, %v1315
        %v1318 = vunpack.c.l.s4 1966171168
        %v1319 = vunpack.c.0.s8 %v1318
        %v1320 = vlaneseq
        %v1321 = vshrl.u32 %v1320, 7
        %v1322 = vsub.s32 %v1319, %v1321
        %v1323 = vrot.slane %v1307, %v1322
        %v1325 = vunpack.c.l.s4 1966171168
        %v1326 = vunpack.c.0.s8 %v1325
        %v1327 = vlaneseq
        %v1328 = vshrl.u32 %v1327, 7
        %v1329 = vsub.s32 %v1326, %v1328
        %v1330 = vrot.slane %v1308, %v1329
        %v1332 = vunpack.c.l.s4 1966171168
        %v1333 = vunpack.c.0.s8 %v1332
        %v1334 = vlaneseq
        %v1335 = vshrl.u32 %v1334, 7
        %v1336 = vsub.s32 %v1333, %v1335
        %v1337 = vrot.slane %v1309, %v1336
        %v1338 = vcombine.high %v1316, %v1316
        %v1339 = vcombine.high %v1323, %v1323
        %v1340 = vcombine.high %v1330, %v1330
        %v1341 = vcombine.high %v1337, %v1337
        %v1342 = vcombine.high %v1290, %v1290
        %v1344 = vunpack.c.l.s4 1966171168
        %v1345 = vunpack.c.0.s8 %v1344
        %v1346 = vlaneseq
        %v1347 = vshrl.u32 %v1346, 7
        %v1348 = vsub.s32 %v1345, %v1347
        %v1349 = vrot.slane %v1290, %v1348
        %v1351 = vunpack.c.l.s4 1966171168
        %v1352 = vunpack.c.0.s8 %v1351
        %v1353 = vlaneseq
        %v1354 = vshrl.u32 %v1353, 7
        %v1355 = vsub.s32 %v1352, %v1354
        %v1356 = vrot.slane %v1342, %v1355
        %v1357 = vcombine.high %v1349, %v1349
        %v1358 = vcombine.high %v1356, %v1356
        %v1360 = vunpack.c.l.s4 1966171168
        %v1361 = vunpack.c.0.s8 %v1360
        %v1362 = vlaneseq
        %v1363 = vshrl.u32 %v1362, 7
        %v1364 = vsub.s32 %v1361, %v1363
        %v1365 = vrot.slane %v1349, %v1364
        %v1367 = vunpack.c.l.s4 1966171168
        %v1368 = vunpack.c.0.s8 %v1367
        %v1369 = vlaneseq
        %v1370 = vshrl.u32 %v1369, 7
        %v1371 = vsub.s32 %v1368, %v1370
        %v1372 = vrot.slane %v1356, %v1371
        %v1374 = vunpack.c.l.s4 1966171168
        %v1375 = vunpack.c.0.s8 %v1374
        %v1376 = vlaneseq
        %v1377 = vshrl.u32 %v1376, 7
        %v1378 = vsub.s32 %v1375, %v1377
        %v1379 = vrot.slane %v1357, %v1378
        %v1381 = vunpack.c.l.s4 1966171168
        %v1382 = vunpack.c.0.s8 %v1381
        %v1383 = vlaneseq
        %v1384 = vshrl.u32 %v1383, 7
        %v1385 = vsub.s32 %v1382, %v1384
        %v1386 = vrot.slane %v1358, %v1385
        %v1387 = vcombine.high %v1365, %v1365
        %v1388 = vcombine.high %v1372, %v1372
        %v1389 = vcombine.high %v1379, %v1379
        %v1390 = vcombine.high %v1386, %v1386
        %v1391 = vld [vmem:[#allocation4] sm:$0xff]
        %v1392 = vld [vmem:[#allocation4 + $0x8] sm:$0xff]
        %v1393 = vld [vmem:[#allocation4 + $0x10] sm:$0xff]
        %v1394 = vld [vmem:[#allocation4 + $0x18] sm:$0xff]
        %v1395 = vld [vmem:[#allocation4 + $0x20] sm:$0xff]
        %v1396 = vld [vmem:[#allocation4 + $0x28] sm:$0xff]
        %v1397 = vld [vmem:[#allocation4 + $0x30] sm:$0xff]
        %v1398 = vld [vmem:[#allocation4 + $0x38] sm:$0xff]
        %v1399 = vld [vmem:[#allocation4 + $0x40] sm:$0xff]
        %v1400 = vld [vmem:[#allocation4 + $0x48] sm:$0xff]
        %v1401 = vld [vmem:[#allocation4 + $0x50] sm:$0xff]
        %v1402 = vld [vmem:[#allocation4 + $0x58] sm:$0xff]
        %v1403 = vld [vmem:[#allocation4 + $0x60] sm:$0xff]
        %v1404 = vld [vmem:[#allocation4 + $0x68] sm:$0xff]
        %v1405 = vld [vmem:[#allocation4 + $0x70] sm:$0xff]
        %v1406 = vld [vmem:[#allocation4 + $0x78] sm:$0xff]
        %v1407 = vld [vmem:[#allocation4 + $0x80] sm:$0xff]
        %v1408 = vld [vmem:[#allocation4 + $0x88] sm:$0xff]
        %v1409 = vld [vmem:[#allocation4 + $0x90] sm:$0xff]
        %v1410 = vld [vmem:[#allocation4 + $0x98] sm:$0xff]
        %v1411 = vld [vmem:[#allocation4 + $0xa0] sm:$0xff]
        %v1412 = vld [vmem:[#allocation4 + $0xa8] sm:$0xff]
        %v1413 = vld [vmem:[#allocation4 + $0xb0] sm:$0xff]
        %v1414 = vld [vmem:[#allocation4 + $0xb8] sm:$0xff]
        %v1415 = vld [vmem:[#allocation4 + $0xc0] sm:$0xff]
        %v1416 = vld [vmem:[#allocation4 + $0xc8] sm:$0xff]
        %v1417 = vld [vmem:[#allocation4 + $0xd0] sm:$0xff]
        %v1418 = vld [vmem:[#allocation4 + $0xd8] sm:$0xff]
        %v1419 = vld [vmem:[#allocation4 + $0xe0] sm:$0xff]
        %v1420 = vld [vmem:[#allocation4 + $0xe8] sm:$0xff]
        %v1421 = vld [vmem:[#allocation4 + $0xf0] sm:$0xff]
        %v1422 = vld [vmem:[#allocation4 + $0xf8] sm:$0xff]
        %v1423 = vlaneseq
        %v1424 = vshrl.u32 %v1423, 7
        %v1425 = vsub.s32 0, %v1424
        %v1426 = vrot.slane %v1316, %v1425
        %v1427 = vlaneseq
        %v1428 = vshrl.u32 %v1427, 7
        %v1429 = vsub.s32 0, %v1428
        %v1430 = vrot.slane %v1330, %v1429
        %v1431 = vlaneseq
        %v1432 = vshrl.u32 %v1431, 7
        %v1433 = vsub.s32 0, %v1432
        %v1434 = vrot.slane %v1338, %v1433
        %v1435 = vlaneseq
        %v1436 = vshrl.u32 %v1435, 7
        %v1437 = vsub.s32 0, %v1436
        %v1438 = vrot.slane %v1340, %v1437
        %v1439 = vlaneseq
        %v1440 = vshrl.u32 %v1439, 7
        %v1441 = vsub.s32 0, %v1440
        %v1442 = vrot.slane %v1323, %v1441
        %v1443 = vlaneseq
        %v1444 = vshrl.u32 %v1443, 7
        %v1445 = vsub.s32 0, %v1444
        %v1446 = vrot.slane %v1337, %v1445
        %v1447 = vlaneseq
        %v1448 = vshrl.u32 %v1447, 7
        %v1449 = vsub.s32 0, %v1448
        %v1450 = vrot.slane %v1339, %v1449
        %v1451 = vlaneseq
        %v1452 = vshrl.u32 %v1451, 7
        %v1453 = vsub.s32 0, %v1452
        %v1454 = vrot.slane %v1341, %v1453
        %v1455 = vlaneseq
        %v1456 = vshrl.u32 %v1455, 7
        %v1457 = vsub.s32 0, %v1456
        %v1458 = vrot.slane %v1365, %v1457
        %v1459 = vlaneseq
        %v1460 = vshrl.u32 %v1459, 7
        %v1461 = vsub.s32 0, %v1460
        %v1462 = vrot.slane %v1379, %v1461
        %v1463 = vlaneseq
        %v1464 = vshrl.u32 %v1463, 7
        %v1465 = vsub.s32 0, %v1464
        %v1466 = vrot.slane %v1387, %v1465
        %v1467 = vlaneseq
        %v1468 = vshrl.u32 %v1467, 7
        %v1469 = vsub.s32 0, %v1468
        %v1470 = vrot.slane %v1389, %v1469
        %v1471 = vlaneseq
        %v1472 = vshrl.u32 %v1471, 7
        %v1473 = vsub.s32 0, %v1472
        %v1474 = vrot.slane %v1372, %v1473
        %v1475 = vlaneseq
        %v1476 = vshrl.u32 %v1475, 7
        %v1477 = vsub.s32 0, %v1476
        %v1478 = vrot.slane %v1386, %v1477
        %v1479 = vlaneseq
        %v1480 = vshrl.u32 %v1479, 7
        %v1481 = vsub.s32 0, %v1480
        %v1482 = vrot.slane %v1388, %v1481
        %v1483 = vlaneseq
        %v1484 = vshrl.u32 %v1483, 7
        %v1485 = vsub.s32 0, %v1484
        %v1486 = vrot.slane %v1390, %v1485
        %v1503 = vmul.f32 %v1426, %v1391
        %v1504 = vmul.f32 %v1426, %v1392
        %v1505 = vmul.f32 %v1430, %v1393
        %v1506 = vmul.f32 %v1430, %v1394
        %v1507 = vmul.f32 %v1434, %v1395
        %v1508 = vmul.f32 %v1434, %v1396
        %v1509 = vmul.f32 %v1438, %v1397
        %v1510 = vmul.f32 %v1438, %v1398
        %v1511 = vmul.f32 %v1442, %v1399
        %v1512 = vmul.f32 %v1442, %v1400
        %v1513 = vmul.f32 %v1446, %v1401
        %v1514 = vmul.f32 %v1446, %v1402
        %v1515 = vmul.f32 %v1450, %v1403
        %v1516 = vmul.f32 %v1450, %v1404
        %v1517 = vmul.f32 %v1454, %v1405
        %v1518 = vmul.f32 %v1454, %v1406
        %v1519 = vmul.f32 %v1458, %v1407
        %v1520 = vmul.f32 %v1458, %v1408
        %v1521 = vmul.f32 %v1462, %v1409
        %v1522 = vmul.f32 %v1462, %v1410
        %v1523 = vmul.f32 %v1466, %v1411
        %v1524 = vmul.f32 %v1466, %v1412
        %v1525 = vmul.f32 %v1470, %v1413
        %v1526 = vmul.f32 %v1470, %v1414
        %v1527 = vmul.f32 %v1474, %v1415
        %v1528 = vmul.f32 %v1474, %v1416
        %v1529 = vmul.f32 %v1478, %v1417
        %v1530 = vmul.f32 %v1478, %v1418
        %v1531 = vmul.f32 %v1482, %v1419
        %v1532 = vmul.f32 %v1482, %v1420
        %v1533 = vmul.f32 %v1486, %v1421
        %v1534 = vmul.f32 %v1486, %v1422
        %v1535 = vsel %vm1088, %v1503, 0.0
        %v1536 = vsel %vm1088, %v1505, 0.0
        %v1537 = vadd.f32 %v1535, %v1536
        %v1538 = vsel %vm1088, %v1507, 0.0
        %v1539 = vadd.f32 %v1537, %v1538
        %v1540 = vsel %vm1088, %v1509, 0.0
        %v1541 = vadd.f32 %v1539, %v1540
        %v1542 = vsel %vm1088, %v1511, 0.0
        %v1543 = vadd.f32 %v1541, %v1542
        %v1544 = vsel %vm1088, %v1513, 0.0
        %v1545 = vadd.f32 %v1543, %v1544
        %v1546 = vsel %vm1088, %v1515, 0.0
        %v1547 = vadd.f32 %v1545, %v1546
        %v1548 = vsel %vm1088, %v1517, 0.0
        %v1549 = vadd.f32 %v1547, %v1548
        %v1550 = vsel %vm1088, %v1519, 0.0
        %v1551 = vadd.f32 %v1549, %v1550
        %v1552 = vsel %vm1088, %v1521, 0.0
        %v1553 = vadd.f32 %v1551, %v1552
        %v1554 = vsel %vm1088, %v1523, 0.0
        %v1555 = vadd.f32 %v1553, %v1554
        %v1556 = vsel %vm1088, %v1525, 0.0
        %v1557 = vadd.f32 %v1555, %v1556
        %v1558 = vsel %vm1088, %v1527, 0.0
        %v1559 = vadd.f32 %v1557, %v1558
        %v1560 = vsel %vm1088, %v1529, 0.0
        %v1561 = vadd.f32 %v1559, %v1560
        %v1562 = vsel %vm1088, %v1531, 0.0
        %v1563 = vadd.f32 %v1561, %v1562
        %v1564 = vsel %vm1088, %v1533, 0.0
        %v1565 = vadd.f32 %v1563, %v1564
        %v1566 = vsel %vm1088, %v1504, 0.0
        %v1567 = vsel %vm1088, %v1506, 0.0
        %v1568 = vadd.f32 %v1566, %v1567
        %v1569 = vsel %vm1088, %v1508, 0.0
        %v1570 = vadd.f32 %v1568, %v1569
        %v1571 = vsel %vm1088, %v1510, 0.0
        %v1572 = vadd.f32 %v1570, %v1571
        %v1573 = vsel %vm1088, %v1512, 0.0
        %v1574 = vadd.f32 %v1572, %v1573
        %v1575 = vsel %vm1088, %v1514, 0.0
        %v1576 = vadd.f32 %v1574, %v1575
        %v1577 = vsel %vm1088, %v1516, 0.0
        %v1578 = vadd.f32 %v1576, %v1577
        %v1579 = vsel %vm1088, %v1518, 0.0
        %v1580 = vadd.f32 %v1578, %v1579
        %v1581 = vsel %vm1088, %v1520, 0.0
        %v1582 = vadd.f32 %v1580, %v1581
        %v1583 = vsel %vm1088, %v1522, 0.0
        %v1584 = vadd.f32 %v1582, %v1583
        %v1585 = vsel %vm1088, %v1524, 0.0
        %v1586 = vadd.f32 %v1584, %v1585
        %v1587 = vsel %vm1088, %v1526, 0.0
        %v1588 = vadd.f32 %v1586, %v1587
        %v1589 = vsel %vm1088, %v1528, 0.0
        %v1590 = vadd.f32 %v1588, %v1589
        %v1591 = vsel %vm1088, %v1530, 0.0
        %v1592 = vadd.f32 %v1590, %v1591
        %v1593 = vsel %vm1088, %v1532, 0.0
        %v1594 = vadd.f32 %v1592, %v1593
        %v1595 = vsel %vm1088, %v1534, 0.0
        %v1596 = vadd.f32 %v1594, %v1595
        %s1597 = scalar_lea.vmem [#allocation2], %s1287
        %1598 = vst.msk [vmem:[%s1597] sm:$0xff] %vm1088, %v1565
        %1599 = vst.msk [vmem:[%s1597 + $0x8] sm:$0xff] %vm1088, %v1596
      $region53: #{tpu_custom_call.1} parent=47 // loop_footer
        %s1286 = sadd.s32 1, %s1282
      $region54: #{tpu_custom_call.1} parent=47 // loop_footer_branch
        %1281 = sbr.rel target = $region50
      $region55: #{tpu_custom_call.1} parent=47 // loop_exit
        _
      %v1600 = vld [vmem:[#allocation2] sm:$0xff]
      %v1601 = vld [vmem:[#allocation2 + $0x8] sm:$0xff]
      %v1602 = vld [vmem:[#allocation2 + $0x10] sm:$0xff]
      %v1603 = vld [vmem:[#allocation2 + $0x18] sm:$0xff]
      %v1604 = vld [vmem:[#allocation2 + $0x20] sm:$0xff]
      %v1605 = vld [vmem:[#allocation2 + $0x28] sm:$0xff]
      %v1606 = vld [vmem:[#allocation2 + $0x30] sm:$0xff]
      %v1607 = vld [vmem:[#allocation2 + $0x38] sm:$0xff]
      %v1608 = vld [vmem:[#allocation2 + $0x40] sm:$0xff]
      %v1609 = vld [vmem:[#allocation2 + $0x48] sm:$0xff]
      %v1610 = vld [vmem:[#allocation2 + $0x50] sm:$0xff]
      %v1611 = vld [vmem:[#allocation2 + $0x58] sm:$0xff]
      %v1612 = vld [vmem:[#allocation2 + $0x60] sm:$0xff]
      %v1613 = vld [vmem:[#allocation2 + $0x68] sm:$0xff]
      %v1614 = vld [vmem:[#allocation2 + $0x70] sm:$0xff]
      %v1615 = vld [vmem:[#allocation2 + $0x78] sm:$0xff]
      %v1616 = vld [vmem:[#allocation2 + $0x80] sm:$0xff]
      %v1617 = vld [vmem:[#allocation2 + $0x88] sm:$0xff]
      %v1618 = vld [vmem:[#allocation2 + $0x90] sm:$0xff]
      %v1619 = vld [vmem:[#allocation2 + $0x98] sm:$0xff]
      %v1620 = vld [vmem:[#allocation2 + $0xa0] sm:$0xff]
      %v1621 = vld [vmem:[#allocation2 + $0xa8] sm:$0xff]
      %v1622 = vld [vmem:[#allocation2 + $0xb0] sm:$0xff]
      %v1623 = vld [vmem:[#allocation2 + $0xb8] sm:$0xff]
      %v1624 = vld [vmem:[#allocation2 + $0xc0] sm:$0xff]
      %v1625 = vld [vmem:[#allocation2 + $0xc8] sm:$0xff]
      %v1626 = vld [vmem:[#allocation2 + $0xd0] sm:$0xff]
      %v1627 = vld [vmem:[#allocation2 + $0xd8] sm:$0xff]
      %v1628 = vld [vmem:[#allocation2 + $0xe0] sm:$0xff]
      %v1629 = vld [vmem:[#allocation2 + $0xe8] sm:$0xff]
      %v1630 = vld [vmem:[#allocation2 + $0xf0] sm:$0xff]
      %v1631 = vld [vmem:[#allocation2 + $0xf8] sm:$0xff]
      %v1632 = vld [vmem:[%s5] sm:$0xff]
      %v1633 = vld [vmem:[%s5 + $0x8] sm:$0xff]
      %v1634 = vld [vmem:[%s5 + $0x10] sm:$0xff]
      %v1635 = vld [vmem:[%s6] sm:$0x1]
      %v1637 = vlaneseq
      %v1638 = vshrl.u32 %v1637, 7
      %v1639 = vsub.s32 0, %v1638
      %v1640 = vrot.slane %v1635, %v1639
      %vm1642 = vcmask 195584
      %v1644 = vsel %vm1642, %v1600, 0
      %v1647 = vsel %vm1642, %v1601, 0
      %v1650 = vsel %vm1642, %v1602, 0
      %v1653 = vsel %vm1642, %v1603, 0
      %v1656 = vsel %vm1642, %v1604, 0
      %v1659 = vsel %vm1642, %v1605, 0
      %v1662 = vsel %vm1642, %v1606, 0
      %v1665 = vsel %vm1642, %v1607, 0
      %v1668 = vsel %vm1642, %v1608, 0
      %v1671 = vsel %vm1642, %v1609, 0
      %v1674 = vsel %vm1642, %v1610, 0
      %v1677 = vsel %vm1642, %v1611, 0
      %v1680 = vsel %vm1642, %v1612, 0
      %v1683 = vsel %vm1642, %v1613, 0
      %v1686 = vsel %vm1642, %v1614, 0
      %v1689 = vsel %vm1642, %v1615, 0
      %v1692 = vsel %vm1642, %v1616, 0
      %v1695 = vsel %vm1642, %v1617, 0
      %v1698 = vsel %vm1642, %v1618, 0
      %v1701 = vsel %vm1642, %v1619, 0
      %v1704 = vsel %vm1642, %v1620, 0
      %v1707 = vsel %vm1642, %v1621, 0
      %v1710 = vsel %vm1642, %v1622, 0
      %v1713 = vsel %vm1642, %v1623, 0
      %v1716 = vsel %vm1642, %v1624, 0
      %v1719 = vsel %vm1642, %v1625, 0
      %v1722 = vsel %vm1642, %v1626, 0
      %v1725 = vsel %vm1642, %v1627, 0
      %v1728 = vsel %vm1642, %v1628, 0
      %v1731 = vsel %vm1642, %v1629, 0
      %v1734 = vsel %vm1642, %v1630, 0
      %v1737 = vsel %vm1642, %v1631, 0
      %1739 = vmatprep.subr.mxu0 0.0
      %1740 = vmatpush1.msra.mxu0 0.0
      %1741 = vmatprep.subr.mxu0 0.0
      %1742 = vmatpush1.msra.mxu0 0.0
      %1743 = vmatprep.subr.mxu0 0.0
      %1744 = vmatpush1.msra.mxu0 0.0
      %1745 = vmatprep.subr.mxu0 0.0
      %1746 = vmatpush1.msra.mxu0 0.0
      %1747 = vmatprep.subr.mxu0 0.0
      %1748 = vmatpush1.msra.mxu0 0.0
      %1749 = vmatprep.subr.mxu0 0.0
      %1750 = vmatpush1.msra.mxu0 0.0
      %1751 = vmatprep.subr.mxu0 0.0
      %1752 = vmatpush1.msra.mxu0 0.0
      %1753 = vmatprep.subr.mxu0 0.0
      %1754 = vmatpush1.msra.mxu0 0.0
      %1755 = vmatprep.subr.mxu0 0.0
      %1756 = vmatpush1.msra.mxu0 0.0
      %1757 = vmatprep.subr.mxu0 0.0
      %1758 = vmatpush1.msra.mxu0 0.0
      %1759 = vmatprep.subr.mxu0 0.0
      %1760 = vmatpush1.msra.mxu0 0.0
      %1761 = vmatprep.subr.mxu0 0.0
      %1762 = vmatpush1.msra.mxu0 0.0
      %1763 = vmatprep.subr.mxu0 0.0
      %1764 = vmatpush1.msra.mxu0 0.0
      %1765 = vmatprep.subr.mxu0 0.0
      %1766 = vmatpush1.msra.mxu0 %v1634
      %1767 = vmatprep.subr.mxu0 0.0
      %1768 = vmatpush1.msra.mxu0 %v1633
      %1769 = vmatprep.subr.mxu0 0.0
      %1770 = vmatpush1.msra.mxu0 %v1632
      %1771 = vmatprep.subr.mxu0 0.0
      %1772 = vmatpush2.msra.mxu0 0.0
      %1773 = vmatprep.subr.mxu0 0.0
      %1774 = vmatpush2.msra.mxu0 0.0
      %1775 = vmatprep.subr.mxu0 0.0
      %1776 = vmatpush2.msra.mxu0 0.0
      %1777 = vmatprep.subr.mxu0 0.0
      %1778 = vmatpush2.msra.mxu0 0.0
      %1779 = vmatprep.subr.mxu0 0.0
      %1780 = vmatpush2.msra.mxu0 0.0
      %1781 = vmatprep.subr.mxu0 0.0
      %1782 = vmatpush2.msra.mxu0 0.0
      %1783 = vmatprep.subr.mxu0 0.0
      %1784 = vmatpush2.msra.mxu0 0.0
      %1785 = vmatprep.subr.mxu0 0.0
      %1786 = vmatpush2.msra.mxu0 0.0
      %1787 = vmatprep.subr.mxu0 0.0
      %1788 = vmatpush2.msra.mxu0 0.0
      %1789 = vmatprep.subr.mxu0 0.0
      %1790 = vmatpush2.msra.mxu0 0.0
      %1791 = vmatprep.subr.mxu0 0.0
      %1792 = vmatpush2.msra.mxu0 0.0
      %1793 = vmatprep.subr.mxu0 0.0
      %1794 = vmatpush2.msra.mxu0 0.0
      %1795 = vmatprep.subr.mxu0 0.0
      %1796 = vmatpush2.msra.mxu0 0.0
      %1797 = vmatprep.subr.mxu0 0.0
      %1798 = vmatpush2.msra.mxu0 0.0
      %1799 = vmatprep.subr.mxu0 0.0
      %1800 = vmatpush2.msra.mxu0 0.0
      %1801 = vmatprep.subr.mxu0 0.0
      %1802 = vmatpush2.msra.mxu0 0.0
      %1803 = vmatprep.mubr.f32.mxu0 0.0
      %1804 = vmatmul.mubr.f32.gmra.mxu0 %v1644
      %v1805 = vpop.f32.mrf.mxu0
      %v1806 = vadd.f32 %v1640, %v1805
      %v1807 = vpop.f32.mrf.mxu0
      %1808 = vmatprep.mubr.f32.mxu0 0.0
      %1809 = vmatmul.mubr.f32.gmra.mxu0 %v1647
      %v1810 = vpop.f32.mrf.mxu0
      %v1811 = vadd.f32 %v1640, %v1810
      %v1812 = vpop.f32.mrf.mxu0
      %1813 = vmatprep.mubr.f32.mxu0 0.0
      %1814 = vmatmul.mubr.f32.gmra.mxu0 %v1650
      %v1815 = vpop.f32.mrf.mxu0
      %v1816 = vadd.f32 %v1640, %v1815
      %v1817 = vpop.f32.mrf.mxu0
      %1818 = vmatprep.mubr.f32.mxu0 0.0
      %1819 = vmatmul.mubr.f32.gmra.mxu0 %v1653
      %v1820 = vpop.f32.mrf.mxu0
      %v1821 = vadd.f32 %v1640, %v1820
      %v1822 = vpop.f32.mrf.mxu0
      %1823 = vmatprep.mubr.f32.mxu0 0.0
      %1824 = vmatmul.mubr.f32.gmra.mxu0 %v1656
      %v1825 = vpop.f32.mrf.mxu0
      %v1826 = vadd.f32 %v1640, %v1825
      %v1827 = vpop.f32.mrf.mxu0
      %1828 = vmatprep.mubr.f32.mxu0 0.0
      %1829 = vmatmul.mubr.f32.gmra.mxu0 %v1659
      %v1830 = vpop.f32.mrf.mxu0
      %v1831 = vadd.f32 %v1640, %v1830
      %v1832 = vpop.f32.mrf.mxu0
      %1833 = vmatprep.mubr.f32.mxu0 0.0
      %1834 = vmatmul.mubr.f32.gmra.mxu0 %v1662
      %v1835 = vpop.f32.mrf.mxu0
      %v1836 = vadd.f32 %v1640, %v1835
      %v1837 = vpop.f32.mrf.mxu0
      %1838 = vmatprep.mubr.f32.mxu0 0.0
      %1839 = vmatmul.mubr.f32.gmra.mxu0 %v1665
      %v1840 = vpop.f32.mrf.mxu0
      %v1841 = vadd.f32 %v1640, %v1840
      %v1842 = vpop.f32.mrf.mxu0
      %1843 = vmatprep.mubr.f32.mxu0 0.0
      %1844 = vmatmul.mubr.f32.gmra.mxu0 %v1668
      %v1845 = vpop.f32.mrf.mxu0
      %v1846 = vadd.f32 %v1640, %v1845
      %v1847 = vpop.f32.mrf.mxu0
      %1848 = vmatprep.mubr.f32.mxu0 0.0
      %1849 = vmatmul.mubr.f32.gmra.mxu0 %v1671
      %v1850 = vpop.f32.mrf.mxu0
      %v1851 = vadd.f32 %v1640, %v1850
      %v1852 = vpop.f32.mrf.mxu0
      %1853 = vmatprep.mubr.f32.mxu0 0.0
      %1854 = vmatmul.mubr.f32.gmra.mxu0 %v1674
      %v1855 = vpop.f32.mrf.mxu0
      %v1856 = vadd.f32 %v1640, %v1855
      %v1857 = vpop.f32.mrf.mxu0
      %1858 = vmatprep.mubr.f32.mxu0 0.0
      %1859 = vmatmul.mubr.f32.gmra.mxu0 %v1677
      %v1860 = vpop.f32.mrf.mxu0
      %v1861 = vadd.f32 %v1640, %v1860
      %v1862 = vpop.f32.mrf.mxu0
      %1863 = vmatprep.mubr.f32.mxu0 0.0
      %1864 = vmatmul.mubr.f32.gmra.mxu0 %v1680
      %v1865 = vpop.f32.mrf.mxu0
      %v1866 = vadd.f32 %v1640, %v1865
      %v1867 = vpop.f32.mrf.mxu0
      %1868 = vmatprep.mubr.f32.mxu0 0.0
      %1869 = vmatmul.mubr.f32.gmra.mxu0 %v1683
      %v1870 = vpop.f32.mrf.mxu0
      %v1871 = vadd.f32 %v1640, %v1870
      %v1872 = vpop.f32.mrf.mxu0
      %1873 = vmatprep.mubr.f32.mxu0 0.0
      %1874 = vmatmul.mubr.f32.gmra.mxu0 %v1686
      %v1875 = vpop.f32.mrf.mxu0
      %v1876 = vadd.f32 %v1640, %v1875
      %v1877 = vpop.f32.mrf.mxu0
      %1878 = vmatprep.mubr.f32.mxu0 0.0
      %1879 = vmatmul.mubr.f32.gmra.mxu0 %v1689
      %v1880 = vpop.f32.mrf.mxu0
      %v1881 = vadd.f32 %v1640, %v1880
      %v1882 = vpop.f32.mrf.mxu0
      %1883 = vmatprep.mubr.f32.mxu0 0.0
      %1884 = vmatmul.mubr.f32.gmra.mxu0 %v1692
      %v1885 = vpop.f32.mrf.mxu0
      %v1886 = vadd.f32 %v1640, %v1885
      %v1887 = vpop.f32.mrf.mxu0
      %1888 = vmatprep.mubr.f32.mxu0 0.0
      %1889 = vmatmul.mubr.f32.gmra.mxu0 %v1695
      %v1890 = vpop.f32.mrf.mxu0
      %v1891 = vadd.f32 %v1640, %v1890
      %v1892 = vpop.f32.mrf.mxu0
      %1893 = vmatprep.mubr.f32.mxu0 0.0
      %1894 = vmatmul.mubr.f32.gmra.mxu0 %v1698
      %v1895 = vpop.f32.mrf.mxu0
      %v1896 = vadd.f32 %v1640, %v1895
      %v1897 = vpop.f32.mrf.mxu0
      %1898 = vmatprep.mubr.f32.mxu0 0.0
      %1899 = vmatmul.mubr.f32.gmra.mxu0 %v1701
      %v1900 = vpop.f32.mrf.mxu0
      %v1901 = vadd.f32 %v1640, %v1900
      %v1902 = vpop.f32.mrf.mxu0
      %1903 = vmatprep.mubr.f32.mxu0 0.0
      %1904 = vmatmul.mubr.f32.gmra.mxu0 %v1704
      %v1905 = vpop.f32.mrf.mxu0
      %v1906 = vadd.f32 %v1640, %v1905
      %v1907 = vpop.f32.mrf.mxu0
      %1908 = vmatprep.mubr.f32.mxu0 0.0
      %1909 = vmatmul.mubr.f32.gmra.mxu0 %v1707
      %v1910 = vpop.f32.mrf.mxu0
      %v1911 = vadd.f32 %v1640, %v1910
      %v1912 = vpop.f32.mrf.mxu0
      %1913 = vmatprep.mubr.f32.mxu0 0.0
      %1914 = vmatmul.mubr.f32.gmra.mxu0 %v1710
      %v1915 = vpop.f32.mrf.mxu0
      %v1916 = vadd.f32 %v1640, %v1915
      %v1917 = vpop.f32.mrf.mxu0
      %1918 = vmatprep.mubr.f32.mxu0 0.0
      %1919 = vmatmul.mubr.f32.gmra.mxu0 %v1713
      %v1920 = vpop.f32.mrf.mxu0
      %v1921 = vadd.f32 %v1640, %v1920
      %v1922 = vpop.f32.mrf.mxu0
      %1923 = vmatprep.mubr.f32.mxu0 0.0
      %1924 = vmatmul.mubr.f32.gmra.mxu0 %v1716
      %v1925 = vpop.f32.mrf.mxu0
      %v1926 = vadd.f32 %v1640, %v1925
      %v1927 = vpop.f32.mrf.mxu0
      %1928 = vmatprep.mubr.f32.mxu0 0.0
      %1929 = vmatmul.mubr.f32.gmra.mxu0 %v1719
      %v1930 = vpop.f32.mrf.mxu0
      %v1931 = vadd.f32 %v1640, %v1930
      %v1932 = vpop.f32.mrf.mxu0
      %1933 = vmatprep.mubr.f32.mxu0 0.0
      %1934 = vmatmul.mubr.f32.gmra.mxu0 %v1722
      %v1935 = vpop.f32.mrf.mxu0
      %v1936 = vadd.f32 %v1640, %v1935
      %v1937 = vpop.f32.mrf.mxu0
      %1938 = vmatprep.mubr.f32.mxu0 0.0
      %1939 = vmatmul.mubr.f32.gmra.mxu0 %v1725
      %v1940 = vpop.f32.mrf.mxu0
      %v1941 = vadd.f32 %v1640, %v1940
      %v1942 = vpop.f32.mrf.mxu0
      %1943 = vmatprep.mubr.f32.mxu0 0.0
      %1944 = vmatmul.mubr.f32.gmra.mxu0 %v1728
      %v1945 = vpop.f32.mrf.mxu0
      %v1946 = vadd.f32 %v1640, %v1945
      %v1947 = vpop.f32.mrf.mxu0
      %1948 = vmatprep.mubr.f32.mxu0 0.0
      %1949 = vmatmul.mubr.f32.gmra.mxu0 %v1731
      %v1950 = vpop.f32.mrf.mxu0
      %v1951 = vadd.f32 %v1640, %v1950
      %v1952 = vpop.f32.mrf.mxu0
      %1953 = vmatprep.mubr.f32.mxu0 0.0
      %1954 = vmatmul.mubr.f32.gmra.mxu0 %v1734
      %v1955 = vpop.f32.mrf.mxu0
      %v1956 = vadd.f32 %v1640, %v1955
      %v1957 = vpop.f32.mrf.mxu0
      %1958 = vmatprep.mubr.f32.mxu0 0.0
      %1959 = vmatmul.mubr.f32.gmra.mxu0 %v1737
      %v1960 = vpop.f32.mrf.mxu0
      %v1961 = vadd.f32 %v1640, %v1960
      %v1962 = vpop.f32.mrf.mxu0
      %1963 = vdwg.mxu0
      %1964 = vst.msk [vmem:[%s278] sm:$0xff] %vm1088, %v1806
      %1965 = vst.msk [vmem:[%s278 + $0x8] sm:$0xff] %vm1088, %v1811
      %1966 = vst.msk [vmem:[%s278 + $0x10] sm:$0xff] %vm1088, %v1816
      %1967 = vst.msk [vmem:[%s278 + $0x18] sm:$0xff] %vm1088, %v1821
      %1968 = vst.msk [vmem:[%s278 + $0x20] sm:$0xff] %vm1088, %v1826
      %1969 = vst.msk [vmem:[%s278 + $0x28] sm:$0xff] %vm1088, %v1831
      %1970 = vst.msk [vmem:[%s278 + $0x30] sm:$0xff] %vm1088, %v1836
      %1971 = vst.msk [vmem:[%s278 + $0x38] sm:$0xff] %vm1088, %v1841
      %1972 = vst.msk [vmem:[%s278 + $0x40] sm:$0xff] %vm1088, %v1846
      %1973 = vst.msk [vmem:[%s278 + $0x48] sm:$0xff] %vm1088, %v1851
      %1974 = vst.msk [vmem:[%s278 + $0x50] sm:$0xff] %vm1088, %v1856
      %1975 = vst.msk [vmem:[%s278 + $0x58] sm:$0xff] %vm1088, %v1861
      %1976 = vst.msk [vmem:[%s278 + $0x60] sm:$0xff] %vm1088, %v1866
      %1977 = vst.msk [vmem:[%s278 + $0x68] sm:$0xff] %vm1088, %v1871
      %1978 = vst.msk [vmem:[%s278 + $0x70] sm:$0xff] %vm1088, %v1876
      %1979 = vst.msk [vmem:[%s278 + $0x78] sm:$0xff] %vm1088, %v1881
      %1980 = vst.msk [vmem:[%s278 + $0x80] sm:$0xff] %vm1088, %v1886
      %1981 = vst.msk [vmem:[%s278 + $0x88] sm:$0xff] %vm1088, %v1891
      %1982 = vst.msk [vmem:[%s278 + $0x90] sm:$0xff] %vm1088, %v1896
      %1983 = vst.msk [vmem:[%s278 + $0x98] sm:$0xff] %vm1088, %v1901
      %1984 = vst.msk [vmem:[%s278 + $0xa0] sm:$0xff] %vm1088, %v1906
      %1985 = vst.msk [vmem:[%s278 + $0xa8] sm:$0xff] %vm1088, %v1911
      %1986 = vst.msk [vmem:[%s278 + $0xb0] sm:$0xff] %vm1088, %v1916
      %1987 = vst.msk [vmem:[%s278 + $0xb8] sm:$0xff] %vm1088, %v1921
      %1988 = vst.msk [vmem:[%s278 + $0xc0] sm:$0xff] %vm1088, %v1926
      %1989 = vst.msk [vmem:[%s278 + $0xc8] sm:$0xff] %vm1088, %v1931
      %1990 = vst.msk [vmem:[%s278 + $0xd0] sm:$0xff] %vm1088, %v1936
      %1991 = vst.msk [vmem:[%s278 + $0xd8] sm:$0xff] %vm1088, %v1941
      %1992 = vst.msk [vmem:[%s278 + $0xe0] sm:$0xff] %vm1088, %v1946
      %1993 = vst.msk [vmem:[%s278 + $0xe8] sm:$0xff] %vm1088, %v1951
      %1994 = vst.msk [vmem:[%s278 + $0xf0] sm:$0xff] %vm1088, %v1956
      %1995 = vst.msk [vmem:[%s278 + $0xf8] sm:$0xff] %vm1088, %v1961
      %p1996 = scmp.lt.s32.totalorder %s18, 1
      %s1997 = scalar_select %p1996, %s18, 1
      %s1998 = smul.addr %s1997, 32
      %s1999 = smul.addr %s1998, 8
      %s2000 = scalar_lea.vmem %s7, %s1999
      // Predicated region
      $region56: #{tpu_custom_call.1} parent=47 // pred_check
        %p2001 = pneg %p188
      $region57: #{tpu_custom_call.1} parent=47 // pred_check_branch
        %2003 = sbr.rel (%p2001) target = $region59
      $region58: #{tpu_custom_call.1} parent=47 // pred_region
        _
      $region59: #{tpu_custom_call.1} parent=47 // pred_fallthru
        _
    $region48: #{tpu_custom_call.1} parent=5 // pred_fallthru
      _
    %p2004 = scmp.le.s32.totalorder 2, %s13
    // Predicated region
    $region60: #{tpu_custom_call.1} parent=5 // pred_check
      %p2005 = pneg %p2004
    $region61: #{tpu_custom_call.1} parent=5 // pred_check_branch
      %2007 = sbr.rel (%p2005) target = $region63
    $region62: #{tpu_custom_call.1} parent=5 // pred_region
      %s2008 = ssub.s32 %s13, 2
      // Predicated region
      $region64: #{tpu_custom_call.1} parent=62 // pred_check
        %p2009 = pneg %p194
      $region65: #{tpu_custom_call.1} parent=62 // pred_check_branch
        %2011 = sbr.rel (%p2009) target = $region67
      $region66: #{tpu_custom_call.1} parent=62 // pred_region
        %p2012 = scmp.lt.s32.totalorder %s19, 1
        %s2013 = scalar_select %p2012, %s19, 1
        %s2014 = smul.addr %s2013, 32
        %s2015 = smul.addr %s2014, 8
        %s2016 = scalar_lea.vmem %s7, %s2015
      $region67: #{tpu_custom_call.1} parent=62 // pred_fallthru
        _
    $region63: #{tpu_custom_call.1} parent=5 // pred_fallthru
      _
  $region6: #{tpu_custom_call.1} parent=0 // loop_footer
    %s17 = sadd.s32 1, %s13
  $region7: #{tpu_custom_call.1} parent=0 // loop_footer_branch
    %12 = sbr.rel target = $region3
  $region8: #{tpu_custom_call.1} parent=0 // loop_exit
    _

</llo_original>
